<compile_context>
chip_gen: v7x
topology: tpu7x:2x2x1
jax: 0.10.0
libtpu: 0.0.40
codegen_flags: <defaults>
</compile_context>

<pallas_src>
import functools

import jax
import jax.numpy as jnp
from jax.experimental import pallas as pl
from jax.experimental.pallas import tpu as pltpu

_LANES = 128
_SMALL_N_XLA_FALLBACK = 128  # below this, pallas_call fixed cost dominates -> use XLA path


# ----------------------------------------------------------------------------- kernel
def _remap_kernel(values_ref, table_ref, mapping_ref, out_ref, *,
                  zch_size, hash_size, hash_fn):
    """Remap one (block_rows, 128) lane-major tile of raw ids.

    matched = OR_j (v == table[j]),  mapped = mapping[j] at the matching j
    out     = matched ? mapped : hash_fn(v, hash_size) + zch_size
    Table/mapping are scalars in SMEM; the loop is 1 compare + 1 OR + 1 select per
    entry, all VPU, no 3-D intermediates, no cross-lane (XLU) reductions.
    """
    v = values_ref[...]                                    # (R, 128) int32, lane-major
    matched0 = jnp.zeros(v.shape, dtype=jnp.bool_)
    mapped0 = jnp.zeros(v.shape, dtype=jnp.int32)

    def body(j, carry):
        matched, mapped = carry
        t = table_ref[j]                                   # scalar int32 (SMEM)
        m = mapping_ref[j]                                 # scalar int32 (SMEM)
        eq = v == t
        matched = jnp.logical_or(matched, eq)
        mapped = jnp.where(eq, m, mapped)
        return matched, mapped

    matched, mapped = jax.lax.fori_loop(
        0, zch_size, body, (matched0, mapped0), unroll=True)

    hashed = hash_fn(v, hash_size).astype(jnp.int32) + jnp.int32(zch_size)
    out_ref[...] = jnp.where(matched, mapped, hashed)


# ----------------------------------------------------------------------------- wrappers
def _remap_reference(values, mch_sorted_raw_ids, mch_remapped_ids_mapping,
                     zch_size, hash_size, hash_fn):
    """Pure-JAX reference of MCHManagedCollisionModule.remap (torch semantics)."""
    searched = jnp.searchsorted(mch_sorted_raw_ids, values)          # 'left', like torch
    retrieved = mch_sorted_raw_ids[searched]
    match = retrieved == values
    zch_ids = mch_remapped_ids_mapping[jnp.clip(searched, 0, zch_size - 1)]
    hashed = hash_fn(values, hash_size).astype(jnp.int32) + jnp.int32(zch_size)
    return jnp.where(match, zch_ids, hashed).astype(jnp.int32)


def mch_remap(values, mch_sorted_raw_ids, mch_remapped_ids_mapping, *,
              zch_size, hash_size, hash_fn, block_rows=8):
    """Pallas implementation of MCHManagedCollisionModule.remap."""
    assert block_rows % 8 == 0, "block_rows must be a multiple of 8 (sublane tile)"
    n = values.shape[0]

    # Small batches (or empty): fused XLA gather/where is strictly cheaper.
    if n <= _SMALL_N_XLA_FALLBACK:
        return _remap_reference(values, mch_sorted_raw_ids, mch_remapped_ids_mapping,
                                zch_size, hash_size, hash_fn)

    # Lane-dense 2-D layout for the ids: pad to a whole number of (block_rows, 128) tiles.
    rows = pl.cdiv(n, _LANES)
    rows_padded = max(block_rows, ((rows + block_rows - 1) // block_rows) * block_rows)
    n_padded = rows_padded * _LANES
    vals2d = jnp.zeros((n_padded,), dtype=jnp.int32).at[:n].set(values.astype(jnp.int32))
    vals2d = vals2d.reshape(rows_padded, _LANES)

    # Drop the searchsorted sentinel slot: it can never match a valid raw id.
    table_core = mch_sorted_raw_ids[:zch_size].astype(jnp.int32)
    mapping = mch_remapped_ids_mapping.astype(jnp.int32)

    kernel = functools.partial(_remap_kernel, zch_size=zch_size,
                               hash_size=hash_size, hash_fn=hash_fn)

    out2d = pl.pallas_call(
        kernel,
        out_shape=jax.ShapeDtypeStruct((rows_padded, _LANES), jnp.int32),
        grid_spec=pltpu.PrefetchScalarGridSpec(
            num_scalar_prefetch=0,
            grid=(rows_padded // block_rows,),
            in_specs=[
                # lane-dense value tiles, grid axis over value tiles
                pl.BlockSpec((block_rows, _LANES), lambda i: (i, 0)),
                # MCH table + mapping stay whole, in SMEM (scalar walk in the kernel)
                pl.BlockSpec(memory_space=pltpu.MemorySpace.SMEM),
                pl.BlockSpec(memory_space=pltpu.MemorySpace.SMEM),
            ],
            out_specs=pl.BlockSpec((block_rows, _LANES), lambda i: (i, 0)),
        ),
        # In-place remap: reuse the padded-values HBM buffer for the output.
        input_output_aliases={0: 0},
        compiler_params=pltpu.CompilerParams(
            dimension_semantics=("parallel",),      # megacore-shard value tiles on v7x
            vmem_limit_bytes=32 * 1024 * 1024,      # well under v7x's 64 MiB physical VMEM
        ),
    )(vals2d, table_core, mapping)

    return out2d.reshape(-1)[:n]


def mch_forward(values, lengths, mch_sorted_raw_ids, mch_remapped_ids_mapping,
                history_accumulator, history_offset, current_iter, *,
                zch_size, hash_size, max_history_size, hash_fn,
                is_train=True, force_update=False, count_multiplier=None,
                block_rows=8):
    """JAX/Pallas equivalent of MCHManagedCollisionModule.forward.

    Returns (remapped_values, lengths, new_history, new_history_offset, new_iter).
    """
    new_history = history_accumulator
    new_offset = history_offset
    new_iter = current_iter

    # ---- profile() -----------------------------------------------------------------
    if is_train:
        prof_values = values
        if count_multiplier is not None and count_multiplier > 1:
            prof_values = jnp.tile(values, count_multiplier)
        n_in = prof_values.shape[0]
        free_elements = max_history_size - history_offset
        if force_update or n_in >= free_elements:
            # TODO(synk): coalesce/evict branch (torch.unique + stable argsort +
            # eviction-policy callbacks + MCH buffer re-sort) not implemented.
            raise NotImplementedError("coalesce/evict branch not implemented")
        new_history = jax.lax.dynamic_update_slice(
            history_accumulator, prof_values.astype(history_accumulator.dtype),
            (history_offset,))
        new_offset = history_offset + n_in
        new_iter = current_iter + 1

    # ---- remap() (Pallas kernel) -----------------------------------------------------
    remapped = mch_remap(values, mch_sorted_raw_ids, mch_remapped_ids_mapping,
                         zch_size=zch_size, hash_size=hash_size, hash_fn=hash_fn,
                         block_rows=block_rows)

    # lengths / offsets / weights pass through unchanged (JaggedTensor glue).
    return remapped, lengths, new_history, new_offset, new_iter


# ----------------------------------------------------------------------------- demo
if __name__ == "__main__":
    key = jax.random.PRNGKey(0)

    # Small module configuration.
    zch_size = 64
    hash_size = 64
    max_output_id = zch_size + hash_size          # 128
    max_history_size = 4096
    int32_max = jnp.iinfo(jnp.int32).max

    # Typical MCH hash_func: modulo hashing into the non-ZCH range.
    hash_fn = lambda x, size: jax.lax.rem(x, jnp.int32(size))

    # MCH state: 40 of the 64 ZCH slots hold known sorted raw ids, the rest (and the
    # trailing searchsorted slot) hold the int-max sentinel; the remap mapping is a
    # permutation of [0, zch_size), as it would be after _sort_mch_buffers().
    num_filled = 40
    known_ids = jnp.arange(num_filled, dtype=jnp.int32) * 13 + 3
    mch_sorted_raw_ids = jnp.concatenate(
        [known_ids, jnp.full((zch_size + 1 - num_filled,), int32_max, dtype=jnp.int32)])
    mch_remapped_ids_mapping = (jnp.arange(zch_size, dtype=jnp.int32) * 29 + 7) % zch_size

    history_accumulator = jnp.zeros((max_history_size,), dtype=jnp.int32)
    history_offset = 5
    current_iter = 3

    # Jagged input batch: batch=2, 1500 total raw ids in [0, 600) (mix of ZCH hits
    # and hash fallbacks).
    n_values = 1500
    values = jax.random.randint(key, (n_values,), 0, 600, dtype=jnp.int32)
    lengths = jnp.array([700, 800], dtype=jnp.int32)

    out_values, out_lengths, new_history, new_offset, new_iter = mch_forward(
        values, lengths, mch_sorted_raw_ids, mch_remapped_ids_mapping,
        history_accumulator, history_offset, current_iter,
        zch_size=zch_size, hash_size=hash_size, max_history_size=max_history_size,
        hash_fn=hash_fn)
    jax.block_until_ready(out_values)

    # ---- correctness checks ----------------------------------------------------------
    ref = _remap_reference(values, mch_sorted_raw_ids, mch_remapped_ids_mapping,
                           zch_size, hash_size, hash_fn)
    assert jnp.array_equal(out_values, ref), "remap mismatch vs searchsorted reference"
    assert jnp.array_equal(out_lengths, lengths)                    # metadata passthrough
    assert bool(jnp.all((out_values >= 0) & (out_values < max_output_id)))
    # profile fast path: incoming ids appended into the history accumulator.
    assert jnp.array_equal(
        new_history[history_offset:history_offset + n_values], values)
    assert new_offset == history_offset + n_values
    assert new_iter == current_iter + 1

    print("KERNEL_OK")
</pallas_src>

<mosaic_0001>
module attributes {stable_mosaic.version = 11 : i64} {
  func.func @_remap_kernel(%arg0: i32, %arg1: memref<8x128xi32, #tpu.memory_space<vmem>>, %arg2: memref<64xi32, #tpu.memory_space<smem>>, %arg3: memref<64xi32, #tpu.memory_space<smem>>, %arg4: memref<8x128xi32, #tpu.memory_space<vmem>>) attributes {dimension_semantics = [#tpu.dimension_semantics<parallel>], iteration_bounds = array<i64: 2>, scalar_prefetch = 0 : i64, scratch_operands = 0 : i64, tpu.core_type = #tpu.core_type<tc>, window_params = [{transform_indices = @transform_0, window_bounds = array<i64: 8, 128>}, {transform_indices = @transform_1, window_bounds = array<i64: 64>}, {transform_indices = @transform_2, window_bounds = array<i64: 64>}, {transform_indices = @transform_3, window_bounds = array<i64: 8, 128>}]} {
    %c0 = arith.constant 0 : index
    %c0_0 = arith.constant 0 : index
    %0 = vector.load %arg1[%c0, %c0_0] : memref<8x128xi32, #tpu.memory_space<vmem>>, vector<8x128xi32>
    %false = arith.constant false
    %1 = vector.broadcast %false : i1 to vector<8x128xi1>
    %c0_i32 = arith.constant 0 : i32
    %2 = vector.broadcast %c0_i32 : i32 to vector<8x128xi32>
    %c0_i32_1 = arith.constant 0 : i32
    %3 = arith.index_cast %c0_i32_1 : i32 to index
    %4 = memref.load %arg2[%3] : memref<64xi32, #tpu.memory_space<smem>>
    %5 = arith.index_cast %c0_i32_1 : i32 to index
    %6 = memref.load %arg3[%5] : memref<64xi32, #tpu.memory_space<smem>>
    %7 = vector.broadcast %4 : i32 to vector<8x128xi32>
    %8 = arith.cmpi eq, %0, %7 : vector<8x128xi32>
    %9 = arith.ori %1, %8 : vector<8x128xi1>
    %10 = vector.broadcast %6 : i32 to vector<8x128xi32>
    %11 = arith.select %8, %10, %2 : vector<8x128xi1>, vector<8x128xi32>
    %c1_i32 = arith.constant 1 : i32
    %12 = arith.index_cast %c1_i32 : i32 to index
    %13 = memref.load %arg2[%12] : memref<64xi32, #tpu.memory_space<smem>>
    %14 = arith.index_cast %c1_i32 : i32 to index
    %15 = memref.load %arg3[%14] : memref<64xi32, #tpu.memory_space<smem>>
    %16 = vector.broadcast %13 : i32 to vector<8x128xi32>
    %17 = arith.cmpi eq, %0, %16 : vector<8x128xi32>
    %18 = arith.ori %9, %17 : vector<8x128xi1>
    %19 = vector.broadcast %15 : i32 to vector<8x128xi32>
    %20 = arith.select %17, %19, %11 : vector<8x128xi1>, vector<8x128xi32>
    %c2_i32 = arith.constant 2 : i32
    %21 = arith.index_cast %c2_i32 : i32 to index
    %22 = memref.load %arg2[%21] : memref<64xi32, #tpu.memory_space<smem>>
    %23 = arith.index_cast %c2_i32 : i32 to index
    %24 = memref.load %arg3[%23] : memref<64xi32, #tpu.memory_space<smem>>
    %25 = vector.broadcast %22 : i32 to vector<8x128xi32>
    %26 = arith.cmpi eq, %0, %25 : vector<8x128xi32>
    %27 = arith.ori %18, %26 : vector<8x128xi1>
    %28 = vector.broadcast %24 : i32 to vector<8x128xi32>
    %29 = arith.select %26, %28, %20 : vector<8x128xi1>, vector<8x128xi32>
    %c3_i32 = arith.constant 3 : i32
    %30 = arith.index_cast %c3_i32 : i32 to index
    %31 = memref.load %arg2[%30] : memref<64xi32, #tpu.memory_space<smem>>
    %32 = arith.index_cast %c3_i32 : i32 to index
    %33 = memref.load %arg3[%32] : memref<64xi32, #tpu.memory_space<smem>>
    %34 = vector.broadcast %31 : i32 to vector<8x128xi32>
    %35 = arith.cmpi eq, %0, %34 : vector<8x128xi32>
    %36 = arith.ori %27, %35 : vector<8x128xi1>
    %37 = vector.broadcast %33 : i32 to vector<8x128xi32>
    %38 = arith.select %35, %37, %29 : vector<8x128xi1>, vector<8x128xi32>
    %c4_i32 = arith.constant 4 : i32
    %39 = arith.index_cast %c4_i32 : i32 to index
    %40 = memref.load %arg2[%39] : memref<64xi32, #tpu.memory_space<smem>>
    %41 = arith.index_cast %c4_i32 : i32 to index
    %42 = memref.load %arg3[%41] : memref<64xi32, #tpu.memory_space<smem>>
    %43 = vector.broadcast %40 : i32 to vector<8x128xi32>
    %44 = arith.cmpi eq, %0, %43 : vector<8x128xi32>
    %45 = arith.ori %36, %44 : vector<8x128xi1>
    %46 = vector.broadcast %42 : i32 to vector<8x128xi32>
    %47 = arith.select %44, %46, %38 : vector<8x128xi1>, vector<8x128xi32>
    %c5_i32 = arith.constant 5 : i32
    %48 = arith.index_cast %c5_i32 : i32 to index
    %49 = memref.load %arg2[%48] : memref<64xi32, #tpu.memory_space<smem>>
    %50 = arith.index_cast %c5_i32 : i32 to index
    %51 = memref.load %arg3[%50] : memref<64xi32, #tpu.memory_space<smem>>
    %52 = vector.broadcast %49 : i32 to vector<8x128xi32>
    %53 = arith.cmpi eq, %0, %52 : vector<8x128xi32>
    %54 = arith.ori %45, %53 : vector<8x128xi1>
    %55 = vector.broadcast %51 : i32 to vector<8x128xi32>
    %56 = arith.select %53, %55, %47 : vector<8x128xi1>, vector<8x128xi32>
    %c6_i32 = arith.constant 6 : i32
    %57 = arith.index_cast %c6_i32 : i32 to index
    %58 = memref.load %arg2[%57] : memref<64xi32, #tpu.memory_space<smem>>
    %59 = arith.index_cast %c6_i32 : i32 to index
    %60 = memref.load %arg3[%59] : memref<64xi32, #tpu.memory_space<smem>>
    %61 = vector.broadcast %58 : i32 to vector<8x128xi32>
    %62 = arith.cmpi eq, %0, %61 : vector<8x128xi32>
    %63 = arith.ori %54, %62 : vector<8x128xi1>
    %64 = vector.broadcast %60 : i32 to vector<8x128xi32>
    %65 = arith.select %62, %64, %56 : vector<8x128xi1>, vector<8x128xi32>
    %c7_i32 = arith.constant 7 : i32
    %66 = arith.index_cast %c7_i32 : i32 to index
    %67 = memref.load %arg2[%66] : memref<64xi32, #tpu.memory_space<smem>>
    %68 = arith.index_cast %c7_i32 : i32 to index
    %69 = memref.load %arg3[%68] : memref<64xi32, #tpu.memory_space<smem>>
    %70 = vector.broadcast %67 : i32 to vector<8x128xi32>
    %71 = arith.cmpi eq, %0, %70 : vector<8x128xi32>
    %72 = arith.ori %63, %71 : vector<8x128xi1>
    %73 = vector.broadcast %69 : i32 to vector<8x128xi32>
    %74 = arith.select %71, %73, %65 : vector<8x128xi1>, vector<8x128xi32>
    %c8_i32 = arith.constant 8 : i32
    %75 = arith.index_cast %c8_i32 : i32 to index
    %76 = memref.load %arg2[%75] : memref<64xi32, #tpu.memory_space<smem>>
    %77 = arith.index_cast %c8_i32 : i32 to index
    %78 = memref.load %arg3[%77] : memref<64xi32, #tpu.memory_space<smem>>
    %79 = vector.broadcast %76 : i32 to vector<8x128xi32>
    %80 = arith.cmpi eq, %0, %79 : vector<8x128xi32>
    %81 = arith.ori %72, %80 : vector<8x128xi1>
    %82 = vector.broadcast %78 : i32 to vector<8x128xi32>
    %83 = arith.select %80, %82, %74 : vector<8x128xi1>, vector<8x128xi32>
    %c9_i32 = arith.constant 9 : i32
    %84 = arith.index_cast %c9_i32 : i32 to index
    %85 = memref.load %arg2[%84] : memref<64xi32, #tpu.memory_space<smem>>
    %86 = arith.index_cast %c9_i32 : i32 to index
    %87 = memref.load %arg3[%86] : memref<64xi32, #tpu.memory_space<smem>>
    %88 = vector.broadcast %85 : i32 to vector<8x128xi32>
    %89 = arith.cmpi eq, %0, %88 : vector<8x128xi32>
    %90 = arith.ori %81, %89 : vector<8x128xi1>
    %91 = vector.broadcast %87 : i32 to vector<8x128xi32>
    %92 = arith.select %89, %91, %83 : vector<8x128xi1>, vector<8x128xi32>
    %c10_i32 = arith.constant 10 : i32
    %93 = arith.index_cast %c10_i32 : i32 to index
    %94 = memref.load %arg2[%93] : memref<64xi32, #tpu.memory_space<smem>>
    %95 = arith.index_cast %c10_i32 : i32 to index
    %96 = memref.load %arg3[%95] : memref<64xi32, #tpu.memory_space<smem>>
    %97 = vector.broadcast %94 : i32 to vector<8x128xi32>
    %98 = arith.cmpi eq, %0, %97 : vector<8x128xi32>
    %99 = arith.ori %90, %98 : vector<8x128xi1>
    %100 = vector.broadcast %96 : i32 to vector<8x128xi32>
    %101 = arith.select %98, %100, %92 : vector<8x128xi1>, vector<8x128xi32>
    %c11_i32 = arith.constant 11 : i32
    %102 = arith.index_cast %c11_i32 : i32 to index
    %103 = memref.load %arg2[%102] : memref<64xi32, #tpu.memory_space<smem>>
    %104 = arith.index_cast %c11_i32 : i32 to index
    %105 = memref.load %arg3[%104] : memref<64xi32, #tpu.memory_space<smem>>
    %106 = vector.broadcast %103 : i32 to vector<8x128xi32>
    %107 = arith.cmpi eq, %0, %106 : vector<8x128xi32>
    %108 = arith.ori %99, %107 : vector<8x128xi1>
    %109 = vector.broadcast %105 : i32 to vector<8x128xi32>
    %110 = arith.select %107, %109, %101 : vector<8x128xi1>, vector<8x128xi32>
    %c12_i32 = arith.constant 12 : i32
    %111 = arith.index_cast %c12_i32 : i32 to index
    %112 = memref.load %arg2[%111] : memref<64xi32, #tpu.memory_space<smem>>
    %113 = arith.index_cast %c12_i32 : i32 to index
    %114 = memref.load %arg3[%113] : memref<64xi32, #tpu.memory_space<smem>>
    %115 = vector.broadcast %112 : i32 to vector<8x128xi32>
    %116 = arith.cmpi eq, %0, %115 : vector<8x128xi32>
    %117 = arith.ori %108, %116 : vector<8x128xi1>
    %118 = vector.broadcast %114 : i32 to vector<8x128xi32>
    %119 = arith.select %116, %118, %110 : vector<8x128xi1>, vector<8x128xi32>
    %c13_i32 = arith.constant 13 : i32
    %120 = arith.index_cast %c13_i32 : i32 to index
    %121 = memref.load %arg2[%120] : memref<64xi32, #tpu.memory_space<smem>>
    %122 = arith.index_cast %c13_i32 : i32 to index
    %123 = memref.load %arg3[%122] : memref<64xi32, #tpu.memory_space<smem>>
    %124 = vector.broadcast %121 : i32 to vector<8x128xi32>
    %125 = arith.cmpi eq, %0, %124 : vector<8x128xi32>
    %126 = arith.ori %117, %125 : vector<8x128xi1>
    %127 = vector.broadcast %123 : i32 to vector<8x128xi32>
    %128 = arith.select %125, %127, %119 : vector<8x128xi1>, vector<8x128xi32>
    %c14_i32 = arith.constant 14 : i32
    %129 = arith.index_cast %c14_i32 : i32 to index
    %130 = memref.load %arg2[%129] : memref<64xi32, #tpu.memory_space<smem>>
    %131 = arith.index_cast %c14_i32 : i32 to index
    %132 = memref.load %arg3[%131] : memref<64xi32, #tpu.memory_space<smem>>
    %133 = vector.broadcast %130 : i32 to vector<8x128xi32>
    %134 = arith.cmpi eq, %0, %133 : vector<8x128xi32>
    %135 = arith.ori %126, %134 : vector<8x128xi1>
    %136 = vector.broadcast %132 : i32 to vector<8x128xi32>
    %137 = arith.select %134, %136, %128 : vector<8x128xi1>, vector<8x128xi32>
    %c15_i32 = arith.constant 15 : i32
    %138 = arith.index_cast %c15_i32 : i32 to index
    %139 = memref.load %arg2[%138] : memref<64xi32, #tpu.memory_space<smem>>
    %140 = arith.index_cast %c15_i32 : i32 to index
    %141 = memref.load %arg3[%140] : memref<64xi32, #tpu.memory_space<smem>>
    %142 = vector.broadcast %139 : i32 to vector<8x128xi32>
    %143 = arith.cmpi eq, %0, %142 : vector<8x128xi32>
    %144 = arith.ori %135, %143 : vector<8x128xi1>
    %145 = vector.broadcast %141 : i32 to vector<8x128xi32>
    %146 = arith.select %143, %145, %137 : vector<8x128xi1>, vector<8x128xi32>
    %c16_i32 = arith.constant 16 : i32
    %147 = arith.index_cast %c16_i32 : i32 to index
    %148 = memref.load %arg2[%147] : memref<64xi32, #tpu.memory_space<smem>>
    %149 = arith.index_cast %c16_i32 : i32 to index
    %150 = memref.load %arg3[%149] : memref<64xi32, #tpu.memory_space<smem>>
    %151 = vector.broadcast %148 : i32 to vector<8x128xi32>
    %152 = arith.cmpi eq, %0, %151 : vector<8x128xi32>
    %153 = arith.ori %144, %152 : vector<8x128xi1>
    %154 = vector.broadcast %150 : i32 to vector<8x128xi32>
    %155 = arith.select %152, %154, %146 : vector<8x128xi1>, vector<8x128xi32>
    %c17_i32 = arith.constant 17 : i32
    %156 = arith.index_cast %c17_i32 : i32 to index
    %157 = memref.load %arg2[%156] : memref<64xi32, #tpu.memory_space<smem>>
    %158 = arith.index_cast %c17_i32 : i32 to index
    %159 = memref.load %arg3[%158] : memref<64xi32, #tpu.memory_space<smem>>
    %160 = vector.broadcast %157 : i32 to vector<8x128xi32>
    %161 = arith.cmpi eq, %0, %160 : vector<8x128xi32>
    %162 = arith.ori %153, %161 : vector<8x128xi1>
    %163 = vector.broadcast %159 : i32 to vector<8x128xi32>
    %164 = arith.select %161, %163, %155 : vector<8x128xi1>, vector<8x128xi32>
    %c18_i32 = arith.constant 18 : i32
    %165 = arith.index_cast %c18_i32 : i32 to index
    %166 = memref.load %arg2[%165] : memref<64xi32, #tpu.memory_space<smem>>
    %167 = arith.index_cast %c18_i32 : i32 to index
    %168 = memref.load %arg3[%167] : memref<64xi32, #tpu.memory_space<smem>>
    %169 = vector.broadcast %166 : i32 to vector<8x128xi32>
    %170 = arith.cmpi eq, %0, %169 : vector<8x128xi32>
    %171 = arith.ori %162, %170 : vector<8x128xi1>
    %172 = vector.broadcast %168 : i32 to vector<8x128xi32>
    %173 = arith.select %170, %172, %164 : vector<8x128xi1>, vector<8x128xi32>
    %c19_i32 = arith.constant 19 : i32
    %174 = arith.index_cast %c19_i32 : i32 to index
    %175 = memref.load %arg2[%174] : memref<64xi32, #tpu.memory_space<smem>>
    %176 = arith.index_cast %c19_i32 : i32 to index
    %177 = memref.load %arg3[%176] : memref<64xi32, #tpu.memory_space<smem>>
    %178 = vector.broadcast %175 : i32 to vector<8x128xi32>
    %179 = arith.cmpi eq, %0, %178 : vector<8x128xi32>
    %180 = arith.ori %171, %179 : vector<8x128xi1>
    %181 = vector.broadcast %177 : i32 to vector<8x128xi32>
    %182 = arith.select %179, %181, %173 : vector<8x128xi1>, vector<8x128xi32>
    %c20_i32 = arith.constant 20 : i32
    %183 = arith.index_cast %c20_i32 : i32 to index
    %184 = memref.load %arg2[%183] : memref<64xi32, #tpu.memory_space<smem>>
    %185 = arith.index_cast %c20_i32 : i32 to index
    %186 = memref.load %arg3[%185] : memref<64xi32, #tpu.memory_space<smem>>
    %187 = vector.broadcast %184 : i32 to vector<8x128xi32>
    %188 = arith.cmpi eq, %0, %187 : vector<8x128xi32>
    %189 = arith.ori %180, %188 : vector<8x128xi1>
    %190 = vector.broadcast %186 : i32 to vector<8x128xi32>
    %191 = arith.select %188, %190, %182 : vector<8x128xi1>, vector<8x128xi32>
    %c21_i32 = arith.constant 21 : i32
    %192 = arith.index_cast %c21_i32 : i32 to index
    %193 = memref.load %arg2[%192] : memref<64xi32, #tpu.memory_space<smem>>
    %194 = arith.index_cast %c21_i32 : i32 to index
    %195 = memref.load %arg3[%194] : memref<64xi32, #tpu.memory_space<smem>>
    %196 = vector.broadcast %193 : i32 to vector<8x128xi32>
    %197 = arith.cmpi eq, %0, %196 : vector<8x128xi32>
    %198 = arith.ori %189, %197 : vector<8x128xi1>
    %199 = vector.broadcast %195 : i32 to vector<8x128xi32>
    %200 = arith.select %197, %199, %191 : vector<8x128xi1>, vector<8x128xi32>
    %c22_i32 = arith.constant 22 : i32
    %201 = arith.index_cast %c22_i32 : i32 to index
    %202 = memref.load %arg2[%201] : memref<64xi32, #tpu.memory_space<smem>>
    %203 = arith.index_cast %c22_i32 : i32 to index
    %204 = memref.load %arg3[%203] : memref<64xi32, #tpu.memory_space<smem>>
    %205 = vector.broadcast %202 : i32 to vector<8x128xi32>
    %206 = arith.cmpi eq, %0, %205 : vector<8x128xi32>
    %207 = arith.ori %198, %206 : vector<8x128xi1>
    %208 = vector.broadcast %204 : i32 to vector<8x128xi32>
    %209 = arith.select %206, %208, %200 : vector<8x128xi1>, vector<8x128xi32>
    %c23_i32 = arith.constant 23 : i32
    %210 = arith.index_cast %c23_i32 : i32 to index
    %211 = memref.load %arg2[%210] : memref<64xi32, #tpu.memory_space<smem>>
    %212 = arith.index_cast %c23_i32 : i32 to index
    %213 = memref.load %arg3[%212] : memref<64xi32, #tpu.memory_space<smem>>
    %214 = vector.broadcast %211 : i32 to vector<8x128xi32>
    %215 = arith.cmpi eq, %0, %214 : vector<8x128xi32>
    %216 = arith.ori %207, %215 : vector<8x128xi1>
    %217 = vector.broadcast %213 : i32 to vector<8x128xi32>
    %218 = arith.select %215, %217, %209 : vector<8x128xi1>, vector<8x128xi32>
    %c24_i32 = arith.constant 24 : i32
    %219 = arith.index_cast %c24_i32 : i32 to index
    %220 = memref.load %arg2[%219] : memref<64xi32, #tpu.memory_space<smem>>
    %221 = arith.index_cast %c24_i32 : i32 to index
    %222 = memref.load %arg3[%221] : memref<64xi32, #tpu.memory_space<smem>>
    %223 = vector.broadcast %220 : i32 to vector<8x128xi32>
    %224 = arith.cmpi eq, %0, %223 : vector<8x128xi32>
    %225 = arith.ori %216, %224 : vector<8x128xi1>
    %226 = vector.broadcast %222 : i32 to vector<8x128xi32>
    %227 = arith.select %224, %226, %218 : vector<8x128xi1>, vector<8x128xi32>
    %c25_i32 = arith.constant 25 : i32
    %228 = arith.index_cast %c25_i32 : i32 to index
    %229 = memref.load %arg2[%228] : memref<64xi32, #tpu.memory_space<smem>>
    %230 = arith.index_cast %c25_i32 : i32 to index
    %231 = memref.load %arg3[%230] : memref<64xi32, #tpu.memory_space<smem>>
    %232 = vector.broadcast %229 : i32 to vector<8x128xi32>
    %233 = arith.cmpi eq, %0, %232 : vector<8x128xi32>
    %234 = arith.ori %225, %233 : vector<8x128xi1>
    %235 = vector.broadcast %231 : i32 to vector<8x128xi32>
    %236 = arith.select %233, %235, %227 : vector<8x128xi1>, vector<8x128xi32>
    %c26_i32 = arith.constant 26 : i32
    %237 = arith.index_cast %c26_i32 : i32 to index
    %238 = memref.load %arg2[%237] : memref<64xi32, #tpu.memory_space<smem>>
    %239 = arith.index_cast %c26_i32 : i32 to index
    %240 = memref.load %arg3[%239] : memref<64xi32, #tpu.memory_space<smem>>
    %241 = vector.broadcast %238 : i32 to vector<8x128xi32>
    %242 = arith.cmpi eq, %0, %241 : vector<8x128xi32>
    %243 = arith.ori %234, %242 : vector<8x128xi1>
    %244 = vector.broadcast %240 : i32 to vector<8x128xi32>
    %245 = arith.select %242, %244, %236 : vector<8x128xi1>, vector<8x128xi32>
    %c27_i32 = arith.constant 27 : i32
    %246 = arith.index_cast %c27_i32 : i32 to index
    %247 = memref.load %arg2[%246] : memref<64xi32, #tpu.memory_space<smem>>
    %248 = arith.index_cast %c27_i32 : i32 to index
    %249 = memref.load %arg3[%248] : memref<64xi32, #tpu.memory_space<smem>>
    %250 = vector.broadcast %247 : i32 to vector<8x128xi32>
    %251 = arith.cmpi eq, %0, %250 : vector<8x128xi32>
    %252 = arith.ori %243, %251 : vector<8x128xi1>
    %253 = vector.broadcast %249 : i32 to vector<8x128xi32>
    %254 = arith.select %251, %253, %245 : vector<8x128xi1>, vector<8x128xi32>
    %c28_i32 = arith.constant 28 : i32
    %255 = arith.index_cast %c28_i32 : i32 to index
    %256 = memref.load %arg2[%255] : memref<64xi32, #tpu.memory_space<smem>>
    %257 = arith.index_cast %c28_i32 : i32 to index
    %258 = memref.load %arg3[%257] : memref<64xi32, #tpu.memory_space<smem>>
    %259 = vector.broadcast %256 : i32 to vector<8x128xi32>
    %260 = arith.cmpi eq, %0, %259 : vector<8x128xi32>
    %261 = arith.ori %252, %260 : vector<8x128xi1>
    %262 = vector.broadcast %258 : i32 to vector<8x128xi32>
    %263 = arith.select %260, %262, %254 : vector<8x128xi1>, vector<8x128xi32>
    %c29_i32 = arith.constant 29 : i32
    %264 = arith.index_cast %c29_i32 : i32 to index
    %265 = memref.load %arg2[%264] : memref<64xi32, #tpu.memory_space<smem>>
    %266 = arith.index_cast %c29_i32 : i32 to index
    %267 = memref.load %arg3[%266] : memref<64xi32, #tpu.memory_space<smem>>
    %268 = vector.broadcast %265 : i32 to vector<8x128xi32>
    %269 = arith.cmpi eq, %0, %268 : vector<8x128xi32>
    %270 = arith.ori %261, %269 : vector<8x128xi1>
    %271 = vector.broadcast %267 : i32 to vector<8x128xi32>
    %272 = arith.select %269, %271, %263 : vector<8x128xi1>, vector<8x128xi32>
    %c30_i32 = arith.constant 30 : i32
    %273 = arith.index_cast %c30_i32 : i32 to index
    %274 = memref.load %arg2[%273] : memref<64xi32, #tpu.memory_space<smem>>
    %275 = arith.index_cast %c30_i32 : i32 to index
    %276 = memref.load %arg3[%275] : memref<64xi32, #tpu.memory_space<smem>>
    %277 = vector.broadcast %274 : i32 to vector<8x128xi32>
    %278 = arith.cmpi eq, %0, %277 : vector<8x128xi32>
    %279 = arith.ori %270, %278 : vector<8x128xi1>
    %280 = vector.broadcast %276 : i32 to vector<8x128xi32>
    %281 = arith.select %278, %280, %272 : vector<8x128xi1>, vector<8x128xi32>
    %c31_i32 = arith.constant 31 : i32
    %282 = arith.index_cast %c31_i32 : i32 to index
    %283 = memref.load %arg2[%282] : memref<64xi32, #tpu.memory_space<smem>>
    %284 = arith.index_cast %c31_i32 : i32 to index
    %285 = memref.load %arg3[%284] : memref<64xi32, #tpu.memory_space<smem>>
    %286 = vector.broadcast %283 : i32 to vector<8x128xi32>
    %287 = arith.cmpi eq, %0, %286 : vector<8x128xi32>
    %288 = arith.ori %279, %287 : vector<8x128xi1>
    %289 = vector.broadcast %285 : i32 to vector<8x128xi32>
    %290 = arith.select %287, %289, %281 : vector<8x128xi1>, vector<8x128xi32>
    %c32_i32 = arith.constant 32 : i32
    %291 = arith.index_cast %c32_i32 : i32 to index
    %292 = memref.load %arg2[%291] : memref<64xi32, #tpu.memory_space<smem>>
    %293 = arith.index_cast %c32_i32 : i32 to index
    %294 = memref.load %arg3[%293] : memref<64xi32, #tpu.memory_space<smem>>
    %295 = vector.broadcast %292 : i32 to vector<8x128xi32>
    %296 = arith.cmpi eq, %0, %295 : vector<8x128xi32>
    %297 = arith.ori %288, %296 : vector<8x128xi1>
    %298 = vector.broadcast %294 : i32 to vector<8x128xi32>
    %299 = arith.select %296, %298, %290 : vector<8x128xi1>, vector<8x128xi32>
    %c33_i32 = arith.constant 33 : i32
    %300 = arith.index_cast %c33_i32 : i32 to index
    %301 = memref.load %arg2[%300] : memref<64xi32, #tpu.memory_space<smem>>
    %302 = arith.index_cast %c33_i32 : i32 to index
    %303 = memref.load %arg3[%302] : memref<64xi32, #tpu.memory_space<smem>>
    %304 = vector.broadcast %301 : i32 to vector<8x128xi32>
    %305 = arith.cmpi eq, %0, %304 : vector<8x128xi32>
    %306 = arith.ori %297, %305 : vector<8x128xi1>
    %307 = vector.broadcast %303 : i32 to vector<8x128xi32>
    %308 = arith.select %305, %307, %299 : vector<8x128xi1>, vector<8x128xi32>
    %c34_i32 = arith.constant 34 : i32
    %309 = arith.index_cast %c34_i32 : i32 to index
    %310 = memref.load %arg2[%309] : memref<64xi32, #tpu.memory_space<smem>>
    %311 = arith.index_cast %c34_i32 : i32 to index
    %312 = memref.load %arg3[%311] : memref<64xi32, #tpu.memory_space<smem>>
    %313 = vector.broadcast %310 : i32 to vector<8x128xi32>
    %314 = arith.cmpi eq, %0, %313 : vector<8x128xi32>
    %315 = arith.ori %306, %314 : vector<8x128xi1>
    %316 = vector.broadcast %312 : i32 to vector<8x128xi32>
    %317 = arith.select %314, %316, %308 : vector<8x128xi1>, vector<8x128xi32>
    %c35_i32 = arith.constant 35 : i32
    %318 = arith.index_cast %c35_i32 : i32 to index
    %319 = memref.load %arg2[%318] : memref<64xi32, #tpu.memory_space<smem>>
    %320 = arith.index_cast %c35_i32 : i32 to index
    %321 = memref.load %arg3[%320] : memref<64xi32, #tpu.memory_space<smem>>
    %322 = vector.broadcast %319 : i32 to vector<8x128xi32>
    %323 = arith.cmpi eq, %0, %322 : vector<8x128xi32>
    %324 = arith.ori %315, %323 : vector<8x128xi1>
    %325 = vector.broadcast %321 : i32 to vector<8x128xi32>
    %326 = arith.select %323, %325, %317 : vector<8x128xi1>, vector<8x128xi32>
    %c36_i32 = arith.constant 36 : i32
    %327 = arith.index_cast %c36_i32 : i32 to index
    %328 = memref.load %arg2[%327] : memref<64xi32, #tpu.memory_space<smem>>
    %329 = arith.index_cast %c36_i32 : i32 to index
    %330 = memref.load %arg3[%329] : memref<64xi32, #tpu.memory_space<smem>>
    %331 = vector.broadcast %328 : i32 to vector<8x128xi32>
    %332 = arith.cmpi eq, %0, %331 : vector<8x128xi32>
    %333 = arith.ori %324, %332 : vector<8x128xi1>
    %334 = vector.broadcast %330 : i32 to vector<8x128xi32>
    %335 = arith.select %332, %334, %326 : vector<8x128xi1>, vector<8x128xi32>
    %c37_i32 = arith.constant 37 : i32
    %336 = arith.index_cast %c37_i32 : i32 to index
    %337 = memref.load %arg2[%336] : memref<64xi32, #tpu.memory_space<smem>>
    %338 = arith.index_cast %c37_i32 : i32 to index
    %339 = memref.load %arg3[%338] : memref<64xi32, #tpu.memory_space<smem>>
    %340 = vector.broadcast %337 : i32 to vector<8x128xi32>
    %341 = arith.cmpi eq, %0, %340 : vector<8x128xi32>
    %342 = arith.ori %333, %341 : vector<8x128xi1>
    %343 = vector.broadcast %339 : i32 to vector<8x128xi32>
    %344 = arith.select %341, %343, %335 : vector<8x128xi1>, vector<8x128xi32>
    %c38_i32 = arith.constant 38 : i32
    %345 = arith.index_cast %c38_i32 : i32 to index
    %346 = memref.load %arg2[%345] : memref<64xi32, #tpu.memory_space<smem>>
    %347 = arith.index_cast %c38_i32 : i32 to index
    %348 = memref.load %arg3[%347] : memref<64xi32, #tpu.memory_space<smem>>
    %349 = vector.broadcast %346 : i32 to vector<8x128xi32>
    %350 = arith.cmpi eq, %0, %349 : vector<8x128xi32>
    %351 = arith.ori %342, %350 : vector<8x128xi1>
    %352 = vector.broadcast %348 : i32 to vector<8x128xi32>
    %353 = arith.select %350, %352, %344 : vector<8x128xi1>, vector<8x128xi32>
    %c39_i32 = arith.constant 39 : i32
    %354 = arith.index_cast %c39_i32 : i32 to index
    %355 = memref.load %arg2[%354] : memref<64xi32, #tpu.memory_space<smem>>
    %356 = arith.index_cast %c39_i32 : i32 to index
    %357 = memref.load %arg3[%356] : memref<64xi32, #tpu.memory_space<smem>>
    %358 = vector.broadcast %355 : i32 to vector<8x128xi32>
    %359 = arith.cmpi eq, %0, %358 : vector<8x128xi32>
    %360 = arith.ori %351, %359 : vector<8x128xi1>
    %361 = vector.broadcast %357 : i32 to vector<8x128xi32>
    %362 = arith.select %359, %361, %353 : vector<8x128xi1>, vector<8x128xi32>
    %c40_i32 = arith.constant 40 : i32
    %363 = arith.index_cast %c40_i32 : i32 to index
    %364 = memref.load %arg2[%363] : memref<64xi32, #tpu.memory_space<smem>>
    %365 = arith.index_cast %c40_i32 : i32 to index
    %366 = memref.load %arg3[%365] : memref<64xi32, #tpu.memory_space<smem>>
    %367 = vector.broadcast %364 : i32 to vector<8x128xi32>
    %368 = arith.cmpi eq, %0, %367 : vector<8x128xi32>
    %369 = arith.ori %360, %368 : vector<8x128xi1>
    %370 = vector.broadcast %366 : i32 to vector<8x128xi32>
    %371 = arith.select %368, %370, %362 : vector<8x128xi1>, vector<8x128xi32>
    %c41_i32 = arith.constant 41 : i32
    %372 = arith.index_cast %c41_i32 : i32 to index
    %373 = memref.load %arg2[%372] : memref<64xi32, #tpu.memory_space<smem>>
    %374 = arith.index_cast %c41_i32 : i32 to index
    %375 = memref.load %arg3[%374] : memref<64xi32, #tpu.memory_space<smem>>
    %376 = vector.broadcast %373 : i32 to vector<8x128xi32>
    %377 = arith.cmpi eq, %0, %376 : vector<8x128xi32>
    %378 = arith.ori %369, %377 : vector<8x128xi1>
    %379 = vector.broadcast %375 : i32 to vector<8x128xi32>
    %380 = arith.select %377, %379, %371 : vector<8x128xi1>, vector<8x128xi32>
    %c42_i32 = arith.constant 42 : i32
    %381 = arith.index_cast %c42_i32 : i32 to index
    %382 = memref.load %arg2[%381] : memref<64xi32, #tpu.memory_space<smem>>
    %383 = arith.index_cast %c42_i32 : i32 to index
    %384 = memref.load %arg3[%383] : memref<64xi32, #tpu.memory_space<smem>>
    %385 = vector.broadcast %382 : i32 to vector<8x128xi32>
    %386 = arith.cmpi eq, %0, %385 : vector<8x128xi32>
    %387 = arith.ori %378, %386 : vector<8x128xi1>
    %388 = vector.broadcast %384 : i32 to vector<8x128xi32>
    %389 = arith.select %386, %388, %380 : vector<8x128xi1>, vector<8x128xi32>
    %c43_i32 = arith.constant 43 : i32
    %390 = arith.index_cast %c43_i32 : i32 to index
    %391 = memref.load %arg2[%390] : memref<64xi32, #tpu.memory_space<smem>>
    %392 = arith.index_cast %c43_i32 : i32 to index
    %393 = memref.load %arg3[%392] : memref<64xi32, #tpu.memory_space<smem>>
    %394 = vector.broadcast %391 : i32 to vector<8x128xi32>
    %395 = arith.cmpi eq, %0, %394 : vector<8x128xi32>
    %396 = arith.ori %387, %395 : vector<8x128xi1>
    %397 = vector.broadcast %393 : i32 to vector<8x128xi32>
    %398 = arith.select %395, %397, %389 : vector<8x128xi1>, vector<8x128xi32>
    %c44_i32 = arith.constant 44 : i32
    %399 = arith.index_cast %c44_i32 : i32 to index
    %400 = memref.load %arg2[%399] : memref<64xi32, #tpu.memory_space<smem>>
    %401 = arith.index_cast %c44_i32 : i32 to index
    %402 = memref.load %arg3[%401] : memref<64xi32, #tpu.memory_space<smem>>
    %403 = vector.broadcast %400 : i32 to vector<8x128xi32>
    %404 = arith.cmpi eq, %0, %403 : vector<8x128xi32>
    %405 = arith.ori %396, %404 : vector<8x128xi1>
    %406 = vector.broadcast %402 : i32 to vector<8x128xi32>
    %407 = arith.select %404, %406, %398 : vector<8x128xi1>, vector<8x128xi32>
    %c45_i32 = arith.constant 45 : i32
    %408 = arith.index_cast %c45_i32 : i32 to index
    %409 = memref.load %arg2[%408] : memref<64xi32, #tpu.memory_space<smem>>
    %410 = arith.index_cast %c45_i32 : i32 to index
    %411 = memref.load %arg3[%410] : memref<64xi32, #tpu.memory_space<smem>>
    %412 = vector.broadcast %409 : i32 to vector<8x128xi32>
    %413 = arith.cmpi eq, %0, %412 : vector<8x128xi32>
    %414 = arith.ori %405, %413 : vector<8x128xi1>
    %415 = vector.broadcast %411 : i32 to vector<8x128xi32>
    %416 = arith.select %413, %415, %407 : vector<8x128xi1>, vector<8x128xi32>
    %c46_i32 = arith.constant 46 : i32
    %417 = arith.index_cast %c46_i32 : i32 to index
    %418 = memref.load %arg2[%417] : memref<64xi32, #tpu.memory_space<smem>>
    %419 = arith.index_cast %c46_i32 : i32 to index
    %420 = memref.load %arg3[%419] : memref<64xi32, #tpu.memory_space<smem>>
    %421 = vector.broadcast %418 : i32 to vector<8x128xi32>
    %422 = arith.cmpi eq, %0, %421 : vector<8x128xi32>
    %423 = arith.ori %414, %422 : vector<8x128xi1>
    %424 = vector.broadcast %420 : i32 to vector<8x128xi32>
    %425 = arith.select %422, %424, %416 : vector<8x128xi1>, vector<8x128xi32>
    %c47_i32 = arith.constant 47 : i32
    %426 = arith.index_cast %c47_i32 : i32 to index
    %427 = memref.load %arg2[%426] : memref<64xi32, #tpu.memory_space<smem>>
    %428 = arith.index_cast %c47_i32 : i32 to index
    %429 = memref.load %arg3[%428] : memref<64xi32, #tpu.memory_space<smem>>
    %430 = vector.broadcast %427 : i32 to vector<8x128xi32>
    %431 = arith.cmpi eq, %0, %430 : vector<8x128xi32>
    %432 = arith.ori %423, %431 : vector<8x128xi1>
    %433 = vector.broadcast %429 : i32 to vector<8x128xi32>
    %434 = arith.select %431, %433, %425 : vector<8x128xi1>, vector<8x128xi32>
    %c48_i32 = arith.constant 48 : i32
    %435 = arith.index_cast %c48_i32 : i32 to index
    %436 = memref.load %arg2[%435] : memref<64xi32, #tpu.memory_space<smem>>
    %437 = arith.index_cast %c48_i32 : i32 to index
    %438 = memref.load %arg3[%437] : memref<64xi32, #tpu.memory_space<smem>>
    %439 = vector.broadcast %436 : i32 to vector<8x128xi32>
    %440 = arith.cmpi eq, %0, %439 : vector<8x128xi32>
    %441 = arith.ori %432, %440 : vector<8x128xi1>
    %442 = vector.broadcast %438 : i32 to vector<8x128xi32>
    %443 = arith.select %440, %442, %434 : vector<8x128xi1>, vector<8x128xi32>
    %c49_i32 = arith.constant 49 : i32
    %444 = arith.index_cast %c49_i32 : i32 to index
    %445 = memref.load %arg2[%444] : memref<64xi32, #tpu.memory_space<smem>>
    %446 = arith.index_cast %c49_i32 : i32 to index
    %447 = memref.load %arg3[%446] : memref<64xi32, #tpu.memory_space<smem>>
    %448 = vector.broadcast %445 : i32 to vector<8x128xi32>
    %449 = arith.cmpi eq, %0, %448 : vector<8x128xi32>
    %450 = arith.ori %441, %449 : vector<8x128xi1>
    %451 = vector.broadcast %447 : i32 to vector<8x128xi32>
    %452 = arith.select %449, %451, %443 : vector<8x128xi1>, vector<8x128xi32>
    %c50_i32 = arith.constant 50 : i32
    %453 = arith.index_cast %c50_i32 : i32 to index
    %454 = memref.load %arg2[%453] : memref<64xi32, #tpu.memory_space<smem>>
    %455 = arith.index_cast %c50_i32 : i32 to index
    %456 = memref.load %arg3[%455] : memref<64xi32, #tpu.memory_space<smem>>
    %457 = vector.broadcast %454 : i32 to vector<8x128xi32>
    %458 = arith.cmpi eq, %0, %457 : vector<8x128xi32>
    %459 = arith.ori %450, %458 : vector<8x128xi1>
    %460 = vector.broadcast %456 : i32 to vector<8x128xi32>
    %461 = arith.select %458, %460, %452 : vector<8x128xi1>, vector<8x128xi32>
    %c51_i32 = arith.constant 51 : i32
    %462 = arith.index_cast %c51_i32 : i32 to index
    %463 = memref.load %arg2[%462] : memref<64xi32, #tpu.memory_space<smem>>
    %464 = arith.index_cast %c51_i32 : i32 to index
    %465 = memref.load %arg3[%464] : memref<64xi32, #tpu.memory_space<smem>>
    %466 = vector.broadcast %463 : i32 to vector<8x128xi32>
    %467 = arith.cmpi eq, %0, %466 : vector<8x128xi32>
    %468 = arith.ori %459, %467 : vector<8x128xi1>
    %469 = vector.broadcast %465 : i32 to vector<8x128xi32>
    %470 = arith.select %467, %469, %461 : vector<8x128xi1>, vector<8x128xi32>
    %c52_i32 = arith.constant 52 : i32
    %471 = arith.index_cast %c52_i32 : i32 to index
    %472 = memref.load %arg2[%471] : memref<64xi32, #tpu.memory_space<smem>>
    %473 = arith.index_cast %c52_i32 : i32 to index
    %474 = memref.load %arg3[%473] : memref<64xi32, #tpu.memory_space<smem>>
    %475 = vector.broadcast %472 : i32 to vector<8x128xi32>
    %476 = arith.cmpi eq, %0, %475 : vector<8x128xi32>
    %477 = arith.ori %468, %476 : vector<8x128xi1>
    %478 = vector.broadcast %474 : i32 to vector<8x128xi32>
    %479 = arith.select %476, %478, %470 : vector<8x128xi1>, vector<8x128xi32>
    %c53_i32 = arith.constant 53 : i32
    %480 = arith.index_cast %c53_i32 : i32 to index
    %481 = memref.load %arg2[%480] : memref<64xi32, #tpu.memory_space<smem>>
    %482 = arith.index_cast %c53_i32 : i32 to index
    %483 = memref.load %arg3[%482] : memref<64xi32, #tpu.memory_space<smem>>
    %484 = vector.broadcast %481 : i32 to vector<8x128xi32>
    %485 = arith.cmpi eq, %0, %484 : vector<8x128xi32>
    %486 = arith.ori %477, %485 : vector<8x128xi1>
    %487 = vector.broadcast %483 : i32 to vector<8x128xi32>
    %488 = arith.select %485, %487, %479 : vector<8x128xi1>, vector<8x128xi32>
    %c54_i32 = arith.constant 54 : i32
    %489 = arith.index_cast %c54_i32 : i32 to index
    %490 = memref.load %arg2[%489] : memref<64xi32, #tpu.memory_space<smem>>
    %491 = arith.index_cast %c54_i32 : i32 to index
    %492 = memref.load %arg3[%491] : memref<64xi32, #tpu.memory_space<smem>>
    %493 = vector.broadcast %490 : i32 to vector<8x128xi32>
    %494 = arith.cmpi eq, %0, %493 : vector<8x128xi32>
    %495 = arith.ori %486, %494 : vector<8x128xi1>
    %496 = vector.broadcast %492 : i32 to vector<8x128xi32>
    %497 = arith.select %494, %496, %488 : vector<8x128xi1>, vector<8x128xi32>
    %c55_i32 = arith.constant 55 : i32
    %498 = arith.index_cast %c55_i32 : i32 to index
    %499 = memref.load %arg2[%498] : memref<64xi32, #tpu.memory_space<smem>>
    %500 = arith.index_cast %c55_i32 : i32 to index
    %501 = memref.load %arg3[%500] : memref<64xi32, #tpu.memory_space<smem>>
    %502 = vector.broadcast %499 : i32 to vector<8x128xi32>
    %503 = arith.cmpi eq, %0, %502 : vector<8x128xi32>
    %504 = arith.ori %495, %503 : vector<8x128xi1>
    %505 = vector.broadcast %501 : i32 to vector<8x128xi32>
    %506 = arith.select %503, %505, %497 : vector<8x128xi1>, vector<8x128xi32>
    %c56_i32 = arith.constant 56 : i32
    %507 = arith.index_cast %c56_i32 : i32 to index
    %508 = memref.load %arg2[%507] : memref<64xi32, #tpu.memory_space<smem>>
    %509 = arith.index_cast %c56_i32 : i32 to index
    %510 = memref.load %arg3[%509] : memref<64xi32, #tpu.memory_space<smem>>
    %511 = vector.broadcast %508 : i32 to vector<8x128xi32>
    %512 = arith.cmpi eq, %0, %511 : vector<8x128xi32>
    %513 = arith.ori %504, %512 : vector<8x128xi1>
    %514 = vector.broadcast %510 : i32 to vector<8x128xi32>
    %515 = arith.select %512, %514, %506 : vector<8x128xi1>, vector<8x128xi32>
    %c57_i32 = arith.constant 57 : i32
    %516 = arith.index_cast %c57_i32 : i32 to index
    %517 = memref.load %arg2[%516] : memref<64xi32, #tpu.memory_space<smem>>
    %518 = arith.index_cast %c57_i32 : i32 to index
    %519 = memref.load %arg3[%518] : memref<64xi32, #tpu.memory_space<smem>>
    %520 = vector.broadcast %517 : i32 to vector<8x128xi32>
    %521 = arith.cmpi eq, %0, %520 : vector<8x128xi32>
    %522 = arith.ori %513, %521 : vector<8x128xi1>
    %523 = vector.broadcast %519 : i32 to vector<8x128xi32>
    %524 = arith.select %521, %523, %515 : vector<8x128xi1>, vector<8x128xi32>
    %c58_i32 = arith.constant 58 : i32
    %525 = arith.index_cast %c58_i32 : i32 to index
    %526 = memref.load %arg2[%525] : memref<64xi32, #tpu.memory_space<smem>>
    %527 = arith.index_cast %c58_i32 : i32 to index
    %528 = memref.load %arg3[%527] : memref<64xi32, #tpu.memory_space<smem>>
    %529 = vector.broadcast %526 : i32 to vector<8x128xi32>
    %530 = arith.cmpi eq, %0, %529 : vector<8x128xi32>
    %531 = arith.ori %522, %530 : vector<8x128xi1>
    %532 = vector.broadcast %528 : i32 to vector<8x128xi32>
    %533 = arith.select %530, %532, %524 : vector<8x128xi1>, vector<8x128xi32>
    %c59_i32 = arith.constant 59 : i32
    %534 = arith.index_cast %c59_i32 : i32 to index
    %535 = memref.load %arg2[%534] : memref<64xi32, #tpu.memory_space<smem>>
    %536 = arith.index_cast %c59_i32 : i32 to index
    %537 = memref.load %arg3[%536] : memref<64xi32, #tpu.memory_space<smem>>
    %538 = vector.broadcast %535 : i32 to vector<8x128xi32>
    %539 = arith.cmpi eq, %0, %538 : vector<8x128xi32>
    %540 = arith.ori %531, %539 : vector<8x128xi1>
    %541 = vector.broadcast %537 : i32 to vector<8x128xi32>
    %542 = arith.select %539, %541, %533 : vector<8x128xi1>, vector<8x128xi32>
    %c60_i32 = arith.constant 60 : i32
    %543 = arith.index_cast %c60_i32 : i32 to index
    %544 = memref.load %arg2[%543] : memref<64xi32, #tpu.memory_space<smem>>
    %545 = arith.index_cast %c60_i32 : i32 to index
    %546 = memref.load %arg3[%545] : memref<64xi32, #tpu.memory_space<smem>>
    %547 = vector.broadcast %544 : i32 to vector<8x128xi32>
    %548 = arith.cmpi eq, %0, %547 : vector<8x128xi32>
    %549 = arith.ori %540, %548 : vector<8x128xi1>
    %550 = vector.broadcast %546 : i32 to vector<8x128xi32>
    %551 = arith.select %548, %550, %542 : vector<8x128xi1>, vector<8x128xi32>
    %c61_i32 = arith.constant 61 : i32
    %552 = arith.index_cast %c61_i32 : i32 to index
    %553 = memref.load %arg2[%552] : memref<64xi32, #tpu.memory_space<smem>>
    %554 = arith.index_cast %c61_i32 : i32 to index
    %555 = memref.load %arg3[%554] : memref<64xi32, #tpu.memory_space<smem>>
    %556 = vector.broadcast %553 : i32 to vector<8x128xi32>
    %557 = arith.cmpi eq, %0, %556 : vector<8x128xi32>
    %558 = arith.ori %549, %557 : vector<8x128xi1>
    %559 = vector.broadcast %555 : i32 to vector<8x128xi32>
    %560 = arith.select %557, %559, %551 : vector<8x128xi1>, vector<8x128xi32>
    %c62_i32 = arith.constant 62 : i32
    %561 = arith.index_cast %c62_i32 : i32 to index
    %562 = memref.load %arg2[%561] : memref<64xi32, #tpu.memory_space<smem>>
    %563 = arith.index_cast %c62_i32 : i32 to index
    %564 = memref.load %arg3[%563] : memref<64xi32, #tpu.memory_space<smem>>
    %565 = vector.broadcast %562 : i32 to vector<8x128xi32>
    %566 = arith.cmpi eq, %0, %565 : vector<8x128xi32>
    %567 = arith.ori %558, %566 : vector<8x128xi1>
    %568 = vector.broadcast %564 : i32 to vector<8x128xi32>
    %569 = arith.select %566, %568, %560 : vector<8x128xi1>, vector<8x128xi32>
    %c63_i32 = arith.constant 63 : i32
    %570 = arith.index_cast %c63_i32 : i32 to index
    %571 = memref.load %arg2[%570] : memref<64xi32, #tpu.memory_space<smem>>
    %572 = arith.index_cast %c63_i32 : i32 to index
    %573 = memref.load %arg3[%572] : memref<64xi32, #tpu.memory_space<smem>>
    %574 = vector.broadcast %571 : i32 to vector<8x128xi32>
    %575 = arith.cmpi eq, %0, %574 : vector<8x128xi32>
    %576 = arith.ori %567, %575 : vector<8x128xi1>
    %577 = vector.broadcast %573 : i32 to vector<8x128xi32>
    %578 = arith.select %575, %577, %569 : vector<8x128xi1>, vector<8x128xi32>
    %c64_i32 = arith.constant 64 : i32
    %c64_i32_2 = arith.constant 64 : i32
    %579 = vector.broadcast %c64_i32_2 : i32 to vector<8x128xi32>
    %580 = arith.remsi %0, %579 : vector<8x128xi32>
    %c64_i32_3 = arith.constant 64 : i32
    %581 = vector.broadcast %c64_i32_3 : i32 to vector<8x128xi32>
    %582 = arith.addi %580, %581 : vector<8x128xi32>
    %583 = arith.select %576, %578, %582 : vector<8x128xi1>, vector<8x128xi32>
    %c0_4 = arith.constant 0 : index
    %c0_5 = arith.constant 0 : index
    %584 = vector.load %arg4[%c0_4, %c0_5] : memref<8x128xi32, #tpu.memory_space<vmem>>, vector<8x128xi32>
    tpu.vector_store %arg4[%c0_4, %c0_5], %583 {strides = array<i32>} : memref<8x128xi32, #tpu.memory_space<vmem>>, vector<8x128xi32>,
    return
  }
  func.func @transform_0(%arg0: i32) -> (i32, i32) {
    %c0_i32 = arith.constant 0 : i32
    %c0_i32_0 = arith.constant 0 : i32
    return %arg0, %c0_i32 : i32, i32
  }
  func.func @transform_1(%arg0: i32) -> i32 {
    %c0_i32 = arith.constant 0 : i32
    %c0_i32_0 = arith.constant 0 : i32
    return %c0_i32 : i32
  }
  func.func @transform_2(%arg0: i32) -> i32 {
    %c0_i32 = arith.constant 0 : i32
    %c0_i32_0 = arith.constant 0 : i32
    return %c0_i32 : i32
  }
  func.func @transform_3(%arg0: i32) -> (i32, i32) {
    %c0_i32 = arith.constant 0 : i32
    %c0_i32_0 = arith.constant 0 : i32
    return %arg0, %c0_i32 : i32, i32
  }
}

</mosaic_0001>

<llo_original>
// kernel: tpu_custom_call.1
$region0: #{tpu_custom_call.1}
  #allocation0 [shape = 'u32[]', space=smem, size = 0x4, offset = 0x4, fixed_abs, tag = 'smem constant byte address 0x4 - core index']
  #allocation1 [shape = 'u32[144,128]{1,0:T(1,128)}', space=vmem, size = 0x12000, scoped, tag = 'internal scratch']
  %s0 = inlined_call_operand.hbm [shape: s32[16,128], index: 0, kind: input, shape index: {}, may-alias: {0,3}]
  %s1 = inlined_call_operand.vmem [shape: s32[64], index: 1, kind: input, shape index: {}]
  %s2 = inlined_call_operand.vmem [shape: s32[64], index: 2, kind: input, shape index: {}]
  %s3 = inlined_call_operand.hbm [shape: s32[16,128], index: 3, kind: output, shape index: {}, may-alias: {0,3}]
  %s4 = sld [smem:[#allocation0]]
  $region57: #{tpu_custom_call.1} parent=0
    _
  %s6 = ssub.s32 1, %s4
  %s7 = scalar_select 0, %s6, %s4
  $region1: #{tpu_custom_call.1} parent=0
    #allocation2 [shape = 'u8[8192]{0}', space=vmem, size = 0x2000, scoped, tag = 'input window, operand 0']
    #allocation3 [shape = 's32[2]{0}', space=sflag, size = 0x8, scoped, tag = 'scoped memory for tpu_custom_call.1']
    #allocation4 [shape = 's32[2]{0}', space=sflag, size = 0x8, scoped, tag = 'scoped memory for tpu_custom_call.1']
    #allocation5 [shape = 's32[2]{0}', space=sflag, size = 0x8, scoped, tag = 'scoped memory for tpu_custom_call.1']
    #allocation6 [shape = 'u8[512]{0}', space=smem, size = 0x200, scoped, tag = 'input window, operand 1, single buffered']
    #allocation7 [shape = 'u8[512]{0}', space=smem, size = 0x200, scoped, tag = 'input window, operand 2, single buffered']
    #allocation8 [shape = 's32[1]{0}', space=sflag, size = 0x4, scoped, tag = 'scoped memory for tpu_custom_call.1']
    #allocation9 [shape = 'u8[8192]{0}', space=vmem, size = 0x2000, scoped, tag = 'output window, operand 0']
    %8 = vsyncpa [#allocation3], 0
    %s9 = scalar_lea.sflag [#allocation3], 1
    %10 = vsyncpa %s9, 0
    %11 = vsyncpa [#allocation5], 0
    %12 = vsyncpa [#allocation8], 0
    %13 = vsyncpa [#allocation4], 0
    %s14 = scalar_lea.sflag [#allocation4], 1
    %15 = vsyncpa %s14, 0
    loop: start=0, step=1, limit=4
    $region2: #{tpu_custom_call.1} parent=1 // loop_pre_header
      _
    $region3: #{tpu_custom_call.1} parent=1 // loop_header
      %s17 = sphi 0, %s21
      %p18 = scmp.ge.s32.totalorder %s17, 4
      %s27 = sphi 0, %s29
      %s30 = sphi 0, %s27
      %s31 = sphi 0, %s30
      %s47 = sphi 0, %s31
      %s51 = sphi 0, %s51
      %s53 = sphi 0, %s51
      %s54 = sphi 0, %s53
      %s68 = sphi 0, %s54
      %s72 = sphi 0, %s72
      %s74 = sphi 0, %s72
      %s75 = sphi 0, %s74
      %s89 = sphi 0, %s75
      %s95 = sphi 0, %s97
      %s98 = sphi 0, %s95
      %s99 = sphi 0, %s98
      %s115 = sphi 0, %s99
    $region4: #{tpu_custom_call.1} parent=1 // loop_header_branch
      %20 = sbr.rel (%p18) target = $region8
    $region5: #{tpu_custom_call.1} parent=1 // loop_body
      %s22 = ssub.s32 %s17, 1
      %s23 = ssub.s32 %s17, 2
      %s24 = sadd.s32 %s17, 1
      %s25 = ssub.s32 %s17, %s24
      %p26 = scmp.eq.s32.totalorder %s25, 0
      %s28 = sadd.s32 %s27, 1
      %s29 = scalar_select %p26, %s27, %s28
      %p32 = pneg %p26
      %p33 = scmp.eq.s32.totalorder %s17, 1
      %p34 = por %p32, %p33
      %p35 = scmp.ne.s32.totalorder %s27, %s30
      %p36 = scmp.eq.s32.totalorder %s17, 0
      %p37 = por %p35, %p36
      %p38 = scmp.ne.s32.totalorder %s27, %s30
      %p39 = scmp.eq.s32.totalorder %s22, 1
      %p40 = por %p38, %p39
      %p41 = scmp.ne.s32.totalorder %s30, %s31
      %p42 = scmp.eq.s32.totalorder %s22, 0
      %p43 = por %p41, %p42
      %p44 = scmp.ne.s32.totalorder %s30, %s31
      %p45 = scmp.eq.s32.totalorder %s23, 1
      %p46 = por %p44, %p45
      %p48 = scmp.ne.s32.totalorder %s31, %s47
      %p49 = scmp.eq.s32.totalorder %s23, 0
      %p50 = por %p48, %p49
      %s52 = sadd.s32 %s51, 1
      %p55 = scmp.eq.s32.totalorder %s17, 1
      %p56 = scmp.ne.s32.totalorder %s51, %s53
      %p57 = scmp.eq.s32.totalorder %s17, 0
      %p58 = por %p56, %p57
      %p59 = scmp.ne.s32.totalorder %s51, %s53
      %p60 = scmp.eq.s32.totalorder %s22, 1
      %p61 = por %p59, %p60
      %p62 = scmp.ne.s32.totalorder %s53, %s54
      %p63 = scmp.eq.s32.totalorder %s22, 0
      %p64 = por %p62, %p63
      %p65 = scmp.ne.s32.totalorder %s53, %s54
      %p66 = scmp.eq.s32.totalorder %s23, 1
      %p67 = por %p65, %p66
      %p69 = scmp.ne.s32.totalorder %s54, %s68
      %p70 = scmp.eq.s32.totalorder %s23, 0
      %p71 = por %p69, %p70
      %s73 = sadd.s32 %s72, 1
      %p76 = scmp.eq.s32.totalorder %s17, 1
      %p77 = scmp.ne.s32.totalorder %s72, %s74
      %p78 = scmp.eq.s32.totalorder %s17, 0
      %p79 = por %p77, %p78
      %p80 = scmp.ne.s32.totalorder %s72, %s74
      %p81 = scmp.eq.s32.totalorder %s22, 1
      %p82 = por %p80, %p81
      %p83 = scmp.ne.s32.totalorder %s74, %s75
      %p84 = scmp.eq.s32.totalorder %s22, 0
      %p85 = por %p83, %p84
      %p86 = scmp.ne.s32.totalorder %s74, %s75
      %p87 = scmp.eq.s32.totalorder %s23, 1
      %p88 = por %p86, %p87
      %p90 = scmp.ne.s32.totalorder %s75, %s89
      %p91 = scmp.eq.s32.totalorder %s23, 0
      %p92 = por %p90, %p91
      %s93 = ssub.s32 %s17, %s24
      %p94 = scmp.eq.s32.totalorder %s93, 0
      %s96 = sadd.s32 %s95, 1
      %s97 = scalar_select %p94, %s95, %s96
      %p100 = pneg %p94
      %p101 = scmp.eq.s32.totalorder %s17, 1
      %p102 = por %p100, %p101
      %p103 = scmp.ne.s32.totalorder %s95, %s98
      %p104 = scmp.eq.s32.totalorder %s17, 0
      %p105 = por %p103, %p104
      %p106 = scmp.ne.s32.totalorder %s95, %s98
      %p107 = scmp.eq.s32.totalorder %s22, 1
      %p108 = por %p106, %p107
      %p109 = scmp.ne.s32.totalorder %s98, %s99
      %p110 = scmp.eq.s32.totalorder %s22, 0
      %p111 = por %p109, %p110
      %p112 = scmp.ne.s32.totalorder %s98, %s99
      %p113 = scmp.eq.s32.totalorder %s23, 1
      %p114 = por %p112, %p113
      %p116 = scmp.ne.s32.totalorder %s99, %s115
      %p117 = scmp.eq.s32.totalorder %s23, 0
      %p118 = por %p116, %p117
      %p119 = scmp.le.s32.totalorder 1, %s17
      %p120 = scmp.lt.s32.totalorder %s17, 3
      %p121 = pnand %p119, %p120
      %p122 = pneg %p121
      // Predicated region
      $region9: #{tpu_custom_call.1} parent=5 // pred_check
        _
      $region10: #{tpu_custom_call.1} parent=5 // pred_check_branch
        %124 = sbr.rel (%p121) target = $region12
      $region11: #{tpu_custom_call.1} parent=5 // pred_region
        %s125 = ssub.s32 %s17, 1
        // Predicated region
        $region13: #{tpu_custom_call.1} parent=11 // pred_check
          %p126 = pneg %p64
        $region14: #{tpu_custom_call.1} parent=11 // pred_check_branch
          %128 = sbr.rel (%p126) target = $region16
        $region15: #{tpu_custom_call.1} parent=11 // pred_region
          %s130 = ssub.s32 16, 16
          %131 = vsyncadd [#allocation5], %s130
          %s133 = sshll.u32 %s1, 4
          %s134 = int_to_ptr.vmem [resolvable:$true] %s133
          %136 = dma.vmem_to_smem %s134, 16, [#allocation6], [#allocation5]
        $region16: #{tpu_custom_call.1} parent=11 // pred_fallthru
          _
        // Predicated region
        $region17: #{tpu_custom_call.1} parent=11 // pred_check
          %p137 = pneg %p85
        $region18: #{tpu_custom_call.1} parent=11 // pred_check_branch
          %139 = sbr.rel (%p137) target = $region20
        $region19: #{tpu_custom_call.1} parent=11 // pred_region
          %s141 = ssub.s32 16, 16
          %142 = vsyncadd [#allocation8], %s141
          %s144 = sshll.u32 %s2, 4
          %s145 = int_to_ptr.vmem [resolvable:$true] %s144
          %147 = dma.vmem_to_smem %s145, 16, [#allocation7], [#allocation8]
        $region20: #{tpu_custom_call.1} parent=11 // pred_fallthru
          _
      $region12: #{tpu_custom_call.1} parent=5 // pred_fallthru
        _
      %p148 = scmp.lt.s32.totalorder %s17, 2
      // Predicated region
      $region21: #{tpu_custom_call.1} parent=5 // pred_check
        %p149 = pneg %p148
      $region22: #{tpu_custom_call.1} parent=5 // pred_check_branch
        %151 = sbr.rel (%p149) target = $region24
      $region23: #{tpu_custom_call.1} parent=5 // pred_region
        // Predicated region
        $region25: #{tpu_custom_call.1} parent=23 // pred_check
          %p152 = pneg %p37
        $region26: #{tpu_custom_call.1} parent=23 // pred_check_branch
          %154 = sbr.rel (%p152) target = $region28
        $region27: #{tpu_custom_call.1} parent=23 // pred_region
          %s155 = sand.u32 %s27, 1
          %s156 = scalar_lea.sflag [#allocation3], %s155
          %s157 = sand.u32 %s27, 1
          %s158 = smul.addr %s157, 8
          %s159 = scalar_lea.vmem [#allocation2], %s158
          %s161 = ssub.s32 128, 128
          %162 = vsyncadd %s156, %s161
          %s163 = smul.addr %s17, 128
          %s164 = scalar_lea.hbm %s0, %s163
          %s166 = sshll.u32 %s159, 4
          %s167 = int_to_ptr.vmem [resolvable:$true] %s166
          %169 = dma.hbm_to_vmem [thread:$0]  %s164, 128, %s167, %s156
        $region28: #{tpu_custom_call.1} parent=23 // pred_fallthru
          _
      $region24: #{tpu_custom_call.1} parent=5 // pred_fallthru
        _
      %p170 = scmp.le.s32.totalorder 1, %s17
      %p171 = scmp.lt.s32.totalorder %s17, 3
      %p172 = pnand %p170, %p171
      %p173 = pneg %p172
      // Predicated region
      $region29: #{tpu_custom_call.1} parent=5 // pred_check
        _
      $region30: #{tpu_custom_call.1} parent=5 // pred_check_branch
        %175 = sbr.rel (%p172) target = $region32
      $region31: #{tpu_custom_call.1} parent=5 // pred_region
        %s176 = ssub.s32 %s17, 1
        %s177 = sand.u32 %s30, 1
        %s178 = scalar_lea.sflag [#allocation3], %s177
        %s179 = sand.u32 %s30, 1
        %s180 = smul.addr %s179, 8
        %s181 = scalar_lea.vmem [#allocation2], %s180
        // Predicated region
        $region33: #{tpu_custom_call.1} parent=31 // pred_check
          %p182 = pneg %p43
        $region34: #{tpu_custom_call.1} parent=31 // pred_check_branch
          %184 = sbr.rel (%p182) target = $region36
        $region35: #{tpu_custom_call.1} parent=31 // pred_region
          %185 = dma.done %s178, 128
        $region36: #{tpu_custom_call.1} parent=31 // pred_fallthru
          _
        // Predicated region
        $region37: #{tpu_custom_call.1} parent=31 // pred_check
          %p186 = pneg %p64
        $region38: #{tpu_custom_call.1} parent=31 // pred_check_branch
          %188 = sbr.rel (%p186) target = $region40
        $region39: #{tpu_custom_call.1} parent=31 // pred_region
          %189 = dma.done [#allocation5], 16
        $region40: #{tpu_custom_call.1} parent=31 // pred_fallthru
          _
        // Predicated region
        $region41: #{tpu_custom_call.1} parent=31 // pred_check
          %p190 = pneg %p85
        $region42: #{tpu_custom_call.1} parent=31 // pred_check_branch
          %192 = sbr.rel (%p190) target = $region44
        $region43: #{tpu_custom_call.1} parent=31 // pred_region
          %193 = dma.done [#allocation8], 16
        $region44: #{tpu_custom_call.1} parent=31 // pred_fallthru
          _
        %194 = sfence
        %s195 = sand.u32 %s30, 1
        %s196 = scalar_lea.sflag [#allocation3], %s195
        %s197 = sand.u32 %s30, 1
        %s198 = smul.addr %s197, 8
        %s199 = scalar_lea.vmem [#allocation2], %s198
        %p200 = pneg %p43
        %p201 = pneg %p40
        %p202 = pneg %p64
        %p203 = pneg %p61
        %p204 = pneg %p85
        %p205 = pneg %p82
        %p206 = pneg %p111
        %p207 = pneg %p108
        %s208 = sand.u32 %s98, 1
        %s209 = scalar_lea.sflag [#allocation4], %s208
        %s210 = sand.u32 %s98, 1
        %s211 = smul.addr %s210, 8
        %s212 = scalar_lea.vmem [#allocation9], %s211
        %v213 = vld [vmem:[%s181] sm:$0xff]
        %s214 = sld [smem:[#allocation6]]
        %s215 = sld [smem:[#allocation7]]
        %v216 = vstv %s214
        %vm217 = vcmp.eq.s32.totalorder %v213, %v216
        %v218 = vstv %s215
        %v219 = vsel %vm217, %v218, 0
        %s220 = sld [smem:[#allocation6 + $0x1]]
        %s221 = sld [smem:[#allocation7 + $0x1]]
        %v222 = vstv %s220
        %vm223 = vcmp.eq.s32.totalorder %v213, %v222
        %vm224 = vmor %vm217, %vm223
        %v225 = vstv %s221
        %v226 = vsel %vm223, %v225, %v219
        %s227 = sld [smem:[#allocation6 + $0x2]]
        %s228 = sld [smem:[#allocation7 + $0x2]]
        %v229 = vstv %s227
        %vm230 = vcmp.eq.s32.totalorder %v213, %v229
        %vm231 = vmor %vm224, %vm230
        %v232 = vstv %s228
        %v233 = vsel %vm230, %v232, %v226
        %s234 = sld [smem:[#allocation6 + $0x3]]
        %s235 = sld [smem:[#allocation7 + $0x3]]
        %v236 = vstv %s234
        %vm237 = vcmp.eq.s32.totalorder %v213, %v236
        %vm238 = vmor %vm231, %vm237
        %v239 = vstv %s235
        %v240 = vsel %vm237, %v239, %v233
        %s241 = sld [smem:[#allocation6 + $0x4]]
        %s242 = sld [smem:[#allocation7 + $0x4]]
        %v243 = vstv %s241
        %vm244 = vcmp.eq.s32.totalorder %v213, %v243
        %vm245 = vmor %vm238, %vm244
        %v246 = vstv %s242
        %v247 = vsel %vm244, %v246, %v240
        %s248 = sld [smem:[#allocation6 + $0x5]]
        %s249 = sld [smem:[#allocation7 + $0x5]]
        %v250 = vstv %s248
        %vm251 = vcmp.eq.s32.totalorder %v213, %v250
        %vm252 = vmor %vm245, %vm251
        %v253 = vstv %s249
        %v254 = vsel %vm251, %v253, %v247
        %s255 = sld [smem:[#allocation6 + $0x6]]
        %s256 = sld [smem:[#allocation7 + $0x6]]
        %v257 = vstv %s255
        %vm258 = vcmp.eq.s32.totalorder %v213, %v257
        %vm259 = vmor %vm252, %vm258
        %v260 = vstv %s256
        %v261 = vsel %vm258, %v260, %v254
        %s262 = sld [smem:[#allocation6 + $0x7]]
        %s263 = sld [smem:[#allocation7 + $0x7]]
        %v264 = vstv %s262
        %vm265 = vcmp.eq.s32.totalorder %v213, %v264
        %vm266 = vmor %vm259, %vm265
        %v267 = vstv %s263
        %v268 = vsel %vm265, %v267, %v261
        %s269 = sld [smem:[#allocation6 + $0x8]]
        %s270 = sld [smem:[#allocation7 + $0x8]]
        %v271 = vstv %s269
        %vm272 = vcmp.eq.s32.totalorder %v213, %v271
        %vm273 = vmor %vm266, %vm272
        %v274 = vstv %s270
        %v275 = vsel %vm272, %v274, %v268
        %s276 = sld [smem:[#allocation6 + $0x9]]
        %s277 = sld [smem:[#allocation7 + $0x9]]
        %v278 = vstv %s276
        %vm279 = vcmp.eq.s32.totalorder %v213, %v278
        %vm280 = vmor %vm273, %vm279
        %v281 = vstv %s277
        %v282 = vsel %vm279, %v281, %v275
        %s283 = sld [smem:[#allocation6 + $0xa]]
        %s284 = sld [smem:[#allocation7 + $0xa]]
        %v285 = vstv %s283
        %vm286 = vcmp.eq.s32.totalorder %v213, %v285
        %vm287 = vmor %vm280, %vm286
        %v288 = vstv %s284
        %v289 = vsel %vm286, %v288, %v282
        %s290 = sld [smem:[#allocation6 + $0xb]]
        %s291 = sld [smem:[#allocation7 + $0xb]]
        %v292 = vstv %s290
        %vm293 = vcmp.eq.s32.totalorder %v213, %v292
        %vm294 = vmor %vm287, %vm293
        %v295 = vstv %s291
        %v296 = vsel %vm293, %v295, %v289
        %s297 = sld [smem:[#allocation6 + $0xc]]
        %s298 = sld [smem:[#allocation7 + $0xc]]
        %v299 = vstv %s297
        %vm300 = vcmp.eq.s32.totalorder %v213, %v299
        %vm301 = vmor %vm294, %vm300
        %v302 = vstv %s298
        %v303 = vsel %vm300, %v302, %v296
        %s304 = sld [smem:[#allocation6 + $0xd]]
        %s305 = sld [smem:[#allocation7 + $0xd]]
        %v306 = vstv %s304
        %vm307 = vcmp.eq.s32.totalorder %v213, %v306
        %vm308 = vmor %vm301, %vm307
        %v309 = vstv %s305
        %v310 = vsel %vm307, %v309, %v303
        %s311 = sld [smem:[#allocation6 + $0xe]]
        %s312 = sld [smem:[#allocation7 + $0xe]]
        %v313 = vstv %s311
        %vm314 = vcmp.eq.s32.totalorder %v213, %v313
        %vm315 = vmor %vm308, %vm314
        %v316 = vstv %s312
        %v317 = vsel %vm314, %v316, %v310
        %s318 = sld [smem:[#allocation6 + $0xf]]
        %s319 = sld [smem:[#allocation7 + $0xf]]
        %v320 = vstv %s318
        %vm321 = vcmp.eq.s32.totalorder %v213, %v320
        %vm322 = vmor %vm315, %vm321
        %v323 = vstv %s319
        %v324 = vsel %vm321, %v323, %v317
        %s325 = sld [smem:[#allocation6 + $0x10]]
        %s326 = sld [smem:[#allocation7 + $0x10]]
        %v327 = vstv %s325
        %vm328 = vcmp.eq.s32.totalorder %v213, %v327
        %vm329 = vmor %vm322, %vm328
        %v330 = vstv %s326
        %v331 = vsel %vm328, %v330, %v324
        %s332 = sld [smem:[#allocation6 + $0x11]]
        %s333 = sld [smem:[#allocation7 + $0x11]]
        %v334 = vstv %s332
        %vm335 = vcmp.eq.s32.totalorder %v213, %v334
        %vm336 = vmor %vm329, %vm335
        %v337 = vstv %s333
        %v338 = vsel %vm335, %v337, %v331
        %s339 = sld [smem:[#allocation6 + $0x12]]
        %s340 = sld [smem:[#allocation7 + $0x12]]
        %v341 = vstv %s339
        %vm342 = vcmp.eq.s32.totalorder %v213, %v341
        %vm343 = vmor %vm336, %vm342
        %v344 = vstv %s340
        %v345 = vsel %vm342, %v344, %v338
        %s346 = sld [smem:[#allocation6 + $0x13]]
        %s347 = sld [smem:[#allocation7 + $0x13]]
        %v348 = vstv %s346
        %vm349 = vcmp.eq.s32.totalorder %v213, %v348
        %vm350 = vmor %vm343, %vm349
        %v351 = vstv %s347
        %v352 = vsel %vm349, %v351, %v345
        %s353 = sld [smem:[#allocation6 + $0x14]]
        %s354 = sld [smem:[#allocation7 + $0x14]]
        %v355 = vstv %s353
        %vm356 = vcmp.eq.s32.totalorder %v213, %v355
        %vm357 = vmor %vm350, %vm356
        %v358 = vstv %s354
        %v359 = vsel %vm356, %v358, %v352
        %s360 = sld [smem:[#allocation6 + $0x15]]
        %s361 = sld [smem:[#allocation7 + $0x15]]
        %v362 = vstv %s360
        %vm363 = vcmp.eq.s32.totalorder %v213, %v362
        %vm364 = vmor %vm357, %vm363
        %v365 = vstv %s361
        %v366 = vsel %vm363, %v365, %v359
        %s367 = sld [smem:[#allocation6 + $0x16]]
        %s368 = sld [smem:[#allocation7 + $0x16]]
        %v369 = vstv %s367
        %vm370 = vcmp.eq.s32.totalorder %v213, %v369
        %vm371 = vmor %vm364, %vm370
        %v372 = vstv %s368
        %v373 = vsel %vm370, %v372, %v366
        %s374 = sld [smem:[#allocation6 + $0x17]]
        %s375 = sld [smem:[#allocation7 + $0x17]]
        %v376 = vstv %s374
        %vm377 = vcmp.eq.s32.totalorder %v213, %v376
        %vm378 = vmor %vm371, %vm377
        %v379 = vstv %s375
        %v380 = vsel %vm377, %v379, %v373
        %s381 = sld [smem:[#allocation6 + $0x18]]
        %s382 = sld [smem:[#allocation7 + $0x18]]
        %v383 = vstv %s381
        %vm384 = vcmp.eq.s32.totalorder %v213, %v383
        %vm385 = vmor %vm378, %vm384
        %v386 = vstv %s382
        %v387 = vsel %vm384, %v386, %v380
        %s388 = sld [smem:[#allocation6 + $0x19]]
        %s389 = sld [smem:[#allocation7 + $0x19]]
        %v390 = vstv %s388
        %vm391 = vcmp.eq.s32.totalorder %v213, %v390
        %vm392 = vmor %vm385, %vm391
        %v393 = vstv %s389
        %v394 = vsel %vm391, %v393, %v387
        %s395 = sld [smem:[#allocation6 + $0x1a]]
        %s396 = sld [smem:[#allocation7 + $0x1a]]
        %v397 = vstv %s395
        %vm398 = vcmp.eq.s32.totalorder %v213, %v397
        %vm399 = vmor %vm392, %vm398
        %v400 = vstv %s396
        %v401 = vsel %vm398, %v400, %v394
        %s402 = sld [smem:[#allocation6 + $0x1b]]
        %s403 = sld [smem:[#allocation7 + $0x1b]]
        %v404 = vstv %s402
        %vm405 = vcmp.eq.s32.totalorder %v213, %v404
        %vm406 = vmor %vm399, %vm405
        %v407 = vstv %s403
        %v408 = vsel %vm405, %v407, %v401
        %s409 = sld [smem:[#allocation6 + $0x1c]]
        %s410 = sld [smem:[#allocation7 + $0x1c]]
        %v411 = vstv %s409
        %vm412 = vcmp.eq.s32.totalorder %v213, %v411
        %vm413 = vmor %vm406, %vm412
        %v414 = vstv %s410
        %v415 = vsel %vm412, %v414, %v408
        %s416 = sld [smem:[#allocation6 + $0x1d]]
        %s417 = sld [smem:[#allocation7 + $0x1d]]
        %v418 = vstv %s416
        %vm419 = vcmp.eq.s32.totalorder %v213, %v418
        %vm420 = vmor %vm413, %vm419
        %v421 = vstv %s417
        %v422 = vsel %vm419, %v421, %v415
        %s423 = sld [smem:[#allocation6 + $0x1e]]
        %s424 = sld [smem:[#allocation7 + $0x1e]]
        %v425 = vstv %s423
        %vm426 = vcmp.eq.s32.totalorder %v213, %v425
        %vm427 = vmor %vm420, %vm426
        %v428 = vstv %s424
        %v429 = vsel %vm426, %v428, %v422
        %s430 = sld [smem:[#allocation6 + $0x1f]]
        %s431 = sld [smem:[#allocation7 + $0x1f]]
        %v432 = vstv %s430
        %vm433 = vcmp.eq.s32.totalorder %v213, %v432
        %vm434 = vmor %vm427, %vm433
        %v435 = vstv %s431
        %v436 = vsel %vm433, %v435, %v429
        %s437 = sld [smem:[#allocation6 + $0x20]]
        %s438 = sld [smem:[#allocation7 + $0x20]]
        %v439 = vstv %s437
        %vm440 = vcmp.eq.s32.totalorder %v213, %v439
        %vm441 = vmor %vm434, %vm440
        %v442 = vstv %s438
        %v443 = vsel %vm440, %v442, %v436
        %s444 = sld [smem:[#allocation6 + $0x21]]
        %s445 = sld [smem:[#allocation7 + $0x21]]
        %v446 = vstv %s444
        %vm447 = vcmp.eq.s32.totalorder %v213, %v446
        %vm448 = vmor %vm441, %vm447
        %v449 = vstv %s445
        %v450 = vsel %vm447, %v449, %v443
        %s451 = sld [smem:[#allocation6 + $0x22]]
        %s452 = sld [smem:[#allocation7 + $0x22]]
        %v453 = vstv %s451
        %vm454 = vcmp.eq.s32.totalorder %v213, %v453
        %vm455 = vmor %vm448, %vm454
        %v456 = vstv %s452
        %v457 = vsel %vm454, %v456, %v450
        %s458 = sld [smem:[#allocation6 + $0x23]]
        %s459 = sld [smem:[#allocation7 + $0x23]]
        %v460 = vstv %s458
        %vm461 = vcmp.eq.s32.totalorder %v213, %v460
        %vm462 = vmor %vm455, %vm461
        %v463 = vstv %s459
        %v464 = vsel %vm461, %v463, %v457
        %s465 = sld [smem:[#allocation6 + $0x24]]
        %s466 = sld [smem:[#allocation7 + $0x24]]
        %v467 = vstv %s465
        %vm468 = vcmp.eq.s32.totalorder %v213, %v467
        %vm469 = vmor %vm462, %vm468
        %v470 = vstv %s466
        %v471 = vsel %vm468, %v470, %v464
        %s472 = sld [smem:[#allocation6 + $0x25]]
        %s473 = sld [smem:[#allocation7 + $0x25]]
        %v474 = vstv %s472
        %vm475 = vcmp.eq.s32.totalorder %v213, %v474
        %vm476 = vmor %vm469, %vm475
        %v477 = vstv %s473
        %v478 = vsel %vm475, %v477, %v471
        %s479 = sld [smem:[#allocation6 + $0x26]]
        %s480 = sld [smem:[#allocation7 + $0x26]]
        %v481 = vstv %s479
        %vm482 = vcmp.eq.s32.totalorder %v213, %v481
        %vm483 = vmor %vm476, %vm482
        %v484 = vstv %s480
        %v485 = vsel %vm482, %v484, %v478
        %s486 = sld [smem:[#allocation6 + $0x27]]
        %s487 = sld [smem:[#allocation7 + $0x27]]
        %v488 = vstv %s486
        %vm489 = vcmp.eq.s32.totalorder %v213, %v488
        %vm490 = vmor %vm483, %vm489
        %v491 = vstv %s487
        %v492 = vsel %vm489, %v491, %v485
        %s493 = sld [smem:[#allocation6 + $0x28]]
        %s494 = sld [smem:[#allocation7 + $0x28]]
        %v495 = vstv %s493
        %vm496 = vcmp.eq.s32.totalorder %v213, %v495
        %vm497 = vmor %vm490, %vm496
        %v498 = vstv %s494
        %v499 = vsel %vm496, %v498, %v492
        %s500 = sld [smem:[#allocation6 + $0x29]]
        %s501 = sld [smem:[#allocation7 + $0x29]]
        %v502 = vstv %s500
        %vm503 = vcmp.eq.s32.totalorder %v213, %v502
        %vm504 = vmor %vm497, %vm503
        %v505 = vstv %s501
        %v506 = vsel %vm503, %v505, %v499
        %s507 = sld [smem:[#allocation6 + $0x2a]]
        %s508 = sld [smem:[#allocation7 + $0x2a]]
        %v509 = vstv %s507
        %vm510 = vcmp.eq.s32.totalorder %v213, %v509
        %vm511 = vmor %vm504, %vm510
        %v512 = vstv %s508
        %v513 = vsel %vm510, %v512, %v506
        %s514 = sld [smem:[#allocation6 + $0x2b]]
        %s515 = sld [smem:[#allocation7 + $0x2b]]
        %v516 = vstv %s514
        %vm517 = vcmp.eq.s32.totalorder %v213, %v516
        %vm518 = vmor %vm511, %vm517
        %v519 = vstv %s515
        %v520 = vsel %vm517, %v519, %v513
        %s521 = sld [smem:[#allocation6 + $0x2c]]
        %s522 = sld [smem:[#allocation7 + $0x2c]]
        %v523 = vstv %s521
        %vm524 = vcmp.eq.s32.totalorder %v213, %v523
        %vm525 = vmor %vm518, %vm524
        %v526 = vstv %s522
        %v527 = vsel %vm524, %v526, %v520
        %s528 = sld [smem:[#allocation6 + $0x2d]]
        %s529 = sld [smem:[#allocation7 + $0x2d]]
        %v530 = vstv %s528
        %vm531 = vcmp.eq.s32.totalorder %v213, %v530
        %vm532 = vmor %vm525, %vm531
        %v533 = vstv %s529
        %v534 = vsel %vm531, %v533, %v527
        %s535 = sld [smem:[#allocation6 + $0x2e]]
        %s536 = sld [smem:[#allocation7 + $0x2e]]
        %v537 = vstv %s535
        %vm538 = vcmp.eq.s32.totalorder %v213, %v537
        %vm539 = vmor %vm532, %vm538
        %v540 = vstv %s536
        %v541 = vsel %vm538, %v540, %v534
        %s542 = sld [smem:[#allocation6 + $0x2f]]
        %s543 = sld [smem:[#allocation7 + $0x2f]]
        %v544 = vstv %s542
        %vm545 = vcmp.eq.s32.totalorder %v213, %v544
        %vm546 = vmor %vm539, %vm545
        %v547 = vstv %s543
        %v548 = vsel %vm545, %v547, %v541
        %s549 = sld [smem:[#allocation6 + $0x30]]
        %s550 = sld [smem:[#allocation7 + $0x30]]
        %v551 = vstv %s549
        %vm552 = vcmp.eq.s32.totalorder %v213, %v551
        %vm553 = vmor %vm546, %vm552
        %v554 = vstv %s550
        %v555 = vsel %vm552, %v554, %v548
        %s556 = sld [smem:[#allocation6 + $0x31]]
        %s557 = sld [smem:[#allocation7 + $0x31]]
        %v558 = vstv %s556
        %vm559 = vcmp.eq.s32.totalorder %v213, %v558
        %vm560 = vmor %vm553, %vm559
        %v561 = vstv %s557
        %v562 = vsel %vm559, %v561, %v555
        %s563 = sld [smem:[#allocation6 + $0x32]]
        %s564 = sld [smem:[#allocation7 + $0x32]]
        %v565 = vstv %s563
        %vm566 = vcmp.eq.s32.totalorder %v213, %v565
        %vm567 = vmor %vm560, %vm566
        %v568 = vstv %s564
        %v569 = vsel %vm566, %v568, %v562
        %s570 = sld [smem:[#allocation6 + $0x33]]
        %s571 = sld [smem:[#allocation7 + $0x33]]
        %v572 = vstv %s570
        %vm573 = vcmp.eq.s32.totalorder %v213, %v572
        %vm574 = vmor %vm567, %vm573
        %v575 = vstv %s571
        %v576 = vsel %vm573, %v575, %v569
        %s577 = sld [smem:[#allocation6 + $0x34]]
        %s578 = sld [smem:[#allocation7 + $0x34]]
        %v579 = vstv %s577
        %vm580 = vcmp.eq.s32.totalorder %v213, %v579
        %vm581 = vmor %vm574, %vm580
        %v582 = vstv %s578
        %v583 = vsel %vm580, %v582, %v576
        %s584 = sld [smem:[#allocation6 + $0x35]]
        %s585 = sld [smem:[#allocation7 + $0x35]]
        %v586 = vstv %s584
        %vm587 = vcmp.eq.s32.totalorder %v213, %v586
        %vm588 = vmor %vm581, %vm587
        %v589 = vstv %s585
        %v590 = vsel %vm587, %v589, %v583
        %s591 = sld [smem:[#allocation6 + $0x36]]
        %s592 = sld [smem:[#allocation7 + $0x36]]
        %v593 = vstv %s591
        %vm594 = vcmp.eq.s32.totalorder %v213, %v593
        %vm595 = vmor %vm588, %vm594
        %v596 = vstv %s592
        %v597 = vsel %vm594, %v596, %v590
        %s598 = sld [smem:[#allocation6 + $0x37]]
        %s599 = sld [smem:[#allocation7 + $0x37]]
        %v600 = vstv %s598
        %vm601 = vcmp.eq.s32.totalorder %v213, %v600
        %vm602 = vmor %vm595, %vm601
        %v603 = vstv %s599
        %v604 = vsel %vm601, %v603, %v597
        %s605 = sld [smem:[#allocation6 + $0x38]]
        %s606 = sld [smem:[#allocation7 + $0x38]]
        %v607 = vstv %s605
        %vm608 = vcmp.eq.s32.totalorder %v213, %v607
        %vm609 = vmor %vm602, %vm608
        %v610 = vstv %s606
        %v611 = vsel %vm608, %v610, %v604
        %s612 = sld [smem:[#allocation6 + $0x39]]
        %s613 = sld [smem:[#allocation7 + $0x39]]
        %v614 = vstv %s612
        %vm615 = vcmp.eq.s32.totalorder %v213, %v614
        %vm616 = vmor %vm609, %vm615
        %v617 = vstv %s613
        %v618 = vsel %vm615, %v617, %v611
        %s619 = sld [smem:[#allocation6 + $0x3a]]
        %s620 = sld [smem:[#allocation7 + $0x3a]]
        %v621 = vstv %s619
        %vm622 = vcmp.eq.s32.totalorder %v213, %v621
        %vm623 = vmor %vm616, %vm622
        %v624 = vstv %s620
        %v625 = vsel %vm622, %v624, %v618
        %s626 = sld [smem:[#allocation6 + $0x3b]]
        %s627 = sld [smem:[#allocation7 + $0x3b]]
        %v628 = vstv %s626
        %vm629 = vcmp.eq.s32.totalorder %v213, %v628
        %vm630 = vmor %vm623, %vm629
        %v631 = vstv %s627
        %v632 = vsel %vm629, %v631, %v625
        %s633 = sld [smem:[#allocation6 + $0x3c]]
        %s634 = sld [smem:[#allocation7 + $0x3c]]
        %v635 = vstv %s633
        %vm636 = vcmp.eq.s32.totalorder %v213, %v635
        %vm637 = vmor %vm630, %vm636
        %v638 = vstv %s634
        %v639 = vsel %vm636, %v638, %v632
        %s640 = sld [smem:[#allocation6 + $0x3d]]
        %s641 = sld [smem:[#allocation7 + $0x3d]]
        %v642 = vstv %s640
        %vm643 = vcmp.eq.s32.totalorder %v213, %v642
        %vm644 = vmor %vm637, %vm643
        %v645 = vstv %s641
        %v646 = vsel %vm643, %v645, %v639
        %s647 = sld [smem:[#allocation6 + $0x3e]]
        %s648 = sld [smem:[#allocation7 + $0x3e]]
        %v649 = vstv %s647
        %vm650 = vcmp.eq.s32.totalorder %v213, %v649
        %vm651 = vmor %vm644, %vm650
        %v652 = vstv %s648
        %v653 = vsel %vm650, %v652, %v646
        %s654 = sld [smem:[#allocation6 + $0x3f]]
        %s655 = sld [smem:[#allocation7 + $0x3f]]
        %v656 = vstv %s654
        %vm657 = vcmp.eq.s32.totalorder %v213, %v656
        %vm658 = vmor %vm651, %vm657
        %v659 = vstv %s655
        %v660 = vsel %vm657, %v659, %v653
        %vm661 = vcmp.lt.s32.totalorder %v213, 0
        %v662 = vsub.s32 0, %v213
        %v663 = vsel %vm661, %v662, %v213
        %v664 = vshrl.u32 %v663, 6
        %v665 = vand.u32 %v663, 63
        %v666 = vsub.s32 0, %v665
        %v667 = vsel %vm661, %v666, %v665
        %v668 = vadd.s32 %v667, 64
        %v669 = vsel %vm658, %v660, %v668
        %670 = vst [vmem:[%s212] sm:$0xff] %v669
        %s671 = sand.u32 %s98, 1
        %s672 = scalar_lea.sflag [#allocation4], %s671
        %s673 = sand.u32 %s98, 1
        %s674 = smul.addr %s673, 8
        %s675 = scalar_lea.vmem [#allocation9], %s674
        // Predicated region
        $region45: #{tpu_custom_call.1} parent=31 // pred_check
          %p676 = pneg %p108
        $region46: #{tpu_custom_call.1} parent=31 // pred_check_branch
          %678 = sbr.rel (%p676) target = $region48
        $region47: #{tpu_custom_call.1} parent=31 // pred_region
          %s680 = ssub.s32 128, 128
          %681 = vsyncadd %s672, %s680
          %s682 = smul.addr %s22, 128
          %s683 = scalar_lea.hbm %s3, %s682
          %s685 = sshll.u32 %s675, 4
          %s686 = int_to_ptr.vmem [resolvable:$true] %s685
          %688 = dma.vmem_to_hbm [thread:$0]  %s686, 128, %s683, %s672
        $region48: #{tpu_custom_call.1} parent=31 // pred_fallthru
          _
      $region32: #{tpu_custom_call.1} parent=5 // pred_fallthru
        _
      %p689 = scmp.le.s32.totalorder 2, %s17
      // Predicated region
      $region49: #{tpu_custom_call.1} parent=5 // pred_check
        %p690 = pneg %p689
      $region50: #{tpu_custom_call.1} parent=5 // pred_check_branch
        %692 = sbr.rel (%p690) target = $region52
      $region51: #{tpu_custom_call.1} parent=5 // pred_region
        %s693 = ssub.s32 %s17, 2
        // Predicated region
        $region53: #{tpu_custom_call.1} parent=51 // pred_check
          %p694 = pneg %p114
        $region54: #{tpu_custom_call.1} parent=51 // pred_check_branch
          %696 = sbr.rel (%p694) target = $region56
        $region55: #{tpu_custom_call.1} parent=51 // pred_region
          %s697 = sand.u32 %s99, 1
          %s698 = scalar_lea.sflag [#allocation4], %s697
          %s699 = sand.u32 %s99, 1
          %s700 = smul.addr %s699, 8
          %s701 = scalar_lea.vmem [#allocation9], %s700
          %702 = dma.done %s698, 128
        $region56: #{tpu_custom_call.1} parent=51 // pred_fallthru
          _
      $region52: #{tpu_custom_call.1} parent=5 // pred_fallthru
        _
    $region6: #{tpu_custom_call.1} parent=1 // loop_footer
      %s21 = sadd.s32 1, %s17
    $region7: #{tpu_custom_call.1} parent=1 // loop_footer_branch
      %16 = sbr.rel target = $region3
    $region8: #{tpu_custom_call.1} parent=1 // loop_exit
      _
    %703 = vsyncpa [#allocation3], 1
    %s704 = scalar_lea.sflag [#allocation3], 1
    %705 = vsyncpa %s704, 1
    %706 = vsyncpa [#allocation4], 1
    %s707 = scalar_lea.sflag [#allocation4], 1
    %708 = vsyncpa %s707, 1
    %709 = vsyncpa [#allocation5], 1
    %s710 = scalar_lea.sflag [#allocation5], 1
    %711 = vsyncpa %s710, 1
    %712 = vsyncpa [#allocation8], 1

</llo_original>
